<compile_context>
chip_gen: v7x
topology: tpu7x:2x2x1
jax: 0.10.0
libtpu: 0.0.40
codegen_flags: <defaults>
</compile_context>

<pallas_src>
import functools

import jax
import jax.numpy as jnp
from jax import lax
from jax.experimental import pallas as pl
from jax.experimental.pallas import tpu as pltpu

OH, OW = 384, 768          # upsample2 hard-coded target size


# ----------------------------------------------------------------------------
# In-kernel helpers (operate on VMEM-resident values).
# ----------------------------------------------------------------------------
def _pad_hw(x, ph, pw):
    """Zero-pad a (H, W, C) value along H and W (inside the kernel, VMEM only)."""
    H, W, C = x.shape
    if pw > 0:
        zw = jnp.zeros((H, pw, C), x.dtype)
        x = jnp.concatenate([zw, x, zw], axis=1)
    if ph > 0:
        zh = jnp.zeros((ph, W + 2 * pw, C), x.dtype)
        x = jnp.concatenate([zh, x, zh], axis=0)
    return x


def _conv2d(x, w, b, kh, kw, act="none"):
    """'same' conv as one im2col patch + a single MXU matmul (K = kh*kw*Cin).

    x: (H, W, Cin) float32;  w: (kh*kw*Cin, Cout) bfloat16;  b: (1, Cout) float32.
    Returns (H, W, Cout) float32 (after activation)."""
    H, W, Cin = x.shape
    Cout = w.shape[-1]
    xp = _pad_hw(x, kh // 2, kw // 2)
    taps = [xp[dy:dy + H, dx:dx + W, :] for dy in range(kh) for dx in range(kw)]
    patch = taps[0] if len(taps) == 1 else jnp.concatenate(taps, axis=-1)
    patch = patch.reshape(H * W, kh * kw * Cin).astype(jnp.bfloat16)
    y = jnp.dot(patch, w, preferred_element_type=jnp.float32) + b
    if act == "relu":
        y = jnp.maximum(y, 0.0)
    elif act == "sigmoid":
        y = jax.nn.sigmoid(y)
    elif act == "tanh":
        y = jnp.tanh(y)
    return y.reshape(H, W, Cout)


def _reconstruct_bins(start, step, L, min_d, max_d):
    """start, step: (1, N) f32  ->  edges (L+1, N), centers (L, N).
    Matches IEBins update_sample: edges = clamp(cumsum([start, step, ...]))."""
    N = start.shape[-1]
    i = lax.broadcasted_iota(jnp.int32, (L + 1, N), 0).astype(jnp.float32)
    edges = jnp.clip(start + i * step, min_d, max_d)
    cur = 0.5 * (edges[:L, :] + edges[1:, :])
    return edges, cur


# ----------------------------------------------------------------------------
# Kernel 1: gru_hidden = tanh(project(e1))
# ----------------------------------------------------------------------------
def _project_kernel(e1_ref, w_ref, b_ref, h_ref):
    h = _conv2d(e1_ref[0].astype(jnp.float32), w_ref[...], b_ref[...], 3, 3, "tanh")
    h_ref[0] = h.astype(h_ref.dtype)


# ----------------------------------------------------------------------------
# Kernel 2 (per step): fused ProjectionInputDepth encoder + SepConvGRU.
# ----------------------------------------------------------------------------
def _enc_gru_kernel(bin_ref, ctx_ref, h_ref,
                    wd1, bd1, wd2, bd2, wd3, bd3, wd4, bd4,
                    wzr1, bzr1, wq1, bq1, wzr2, bzr2, wq2, bq2,
                    hout_ref, *, H, W, L, hid, min_d, max_d):
    bs = bin_ref[0]                                           # (2, N) f32
    _, cur_ln = _reconstruct_bins(bs[0:1, :], bs[1:2, :], L, min_d, max_d)
    cur = jnp.transpose(cur_ln).reshape(H, W, L)              # NHWC for the convs

    # ProjectionInputDepth: convd1(7x7) -> convd2/3(3x3) -> convd4(3x3), all ReLU.
    d = _conv2d(cur, wd1[...], bd1[...], 7, 7, "relu")
    d = _conv2d(d, wd2[...], bd2[...], 3, 3, "relu")
    d = _conv2d(d, wd3[...], bd3[...], 3, 3, "relu")
    d = _conv2d(d, wd4[...], bd4[...], 3, 3, "relu")          # (H, W, 2*hid)

    ctx = ctx_ref[0].astype(jnp.float32)                      # (H, W, Cctx)
    h = h_ref[0].astype(jnp.float32)                          # (H, W, hid)

    def gru_stage(hcur, kh, kw, wzr, bzr, wq, bq):
        # convz + convr fused into one conv (Cout = 2*hid), split on channels.
        hx = jnp.concatenate([hcur, d, ctx], axis=-1)
        zr = _conv2d(hx, wzr[...], bzr[...], kh, kw, "sigmoid")
        z, r = zr[..., :hid], zr[..., hid:]
        q_in = jnp.concatenate([r * hcur, d, ctx], axis=-1)
        q = _conv2d(q_in, wq[...], bq[...], kh, kw, "tanh")
        return (1.0 - z) * hcur + z * q

    h = gru_stage(h, 1, 5, wzr1, bzr1, wq1, bq1)              # horizontal pass
    h = gru_stage(h, 5, 1, wzr2, bzr2, wq2, bq2)              # vertical pass
    hout_ref[0] = h.astype(hout_ref.dtype)


# ----------------------------------------------------------------------------
# Kernel 3 (per step): PHead + softmax + bin statistics (get_label, gather,
# update_sample 'direct') + fused bilinear upsample to 384x768.
# ----------------------------------------------------------------------------
def _phead_bin_up_kernel(h_ref, bin_ref, w1, b1, w2, b2, mh_ref, mwt_ref,
                         maps_ref, binout_ref, *, H, W, L, min_d, max_d):
    N = H * W
    # PHead: conv3x3 + ReLU -> conv3x3 -> softmax over the L bins.
    p = _conv2d(h_ref[0].astype(jnp.float32), w1[...], b1[...], 3, 3, "relu")
    logits = _conv2d(p, w2[...], b2[...], 3, 3, "none").reshape(N, L)
    logits = jnp.transpose(logits)                            # (L, N): pixels on lanes

    bs = bin_ref[0]                                           # (2, N)
    edges, cur = _reconstruct_bins(bs[0:1, :], bs[1:2, :], L, min_d, max_d)

    m = jnp.max(logits, axis=0, keepdims=True)
    e = jnp.exp(logits - m)
    prob = e / jnp.sum(e, axis=0, keepdims=True)

    depth_r = jnp.sum(prob * cur, axis=0, keepdims=True)                        # (1, N)
    unc = jnp.sqrt(jnp.sum(prob * (cur - depth_r) ** 2, axis=0, keepdims=True))  # (1, N)

    # get_label (half-open bins, default 0) + gather of the selected bin centre.
    li = lax.broadcasted_iota(jnp.int32, (L, N), 0)
    in_bin = jnp.logical_and(depth_r >= edges[:L, :], depth_r < edges[1:, :])
    label = jnp.sum(jnp.where(in_bin, li, 0), axis=0, keepdims=True)
    depth_c = jnp.sum(jnp.where(li == label, cur, 0.0), axis=0, keepdims=True)

    # update_sample, IEBins 'direct' mode: new bins centred on depth_r, width = unc.
    # TODO(synk): when unc -> 0 the bins collapse exactly as in the reference (no eps).
    new_start = jnp.maximum(depth_r - 0.5 * unc, min_d)
    new_step = unc * (1.0 / L)
    binout_ref[0] = jnp.concatenate([new_start, new_step], axis=0)

    # Fused upsample2: bilinear (align_corners=False) to 384x768 as two MXU matmuls.
    mh, mwt = mh_ref[...], mwt_ref[...]
    for k, v in enumerate((depth_r, depth_c, unc)):
        img = v.reshape(H, W)
        up = jnp.dot(jnp.dot(mh, img, preferred_element_type=jnp.float32),
                     mwt, preferred_element_type=jnp.float32)
        maps_ref[0, k] = up


# ----------------------------------------------------------------------------
# pallas_call wrappers.
# ----------------------------------------------------------------------------
_CPARAMS = pltpu.CompilerParams(dimension_semantics=("parallel",),
                                vmem_limit_bytes=32 * 1024 * 1024)


def _w_spec(a):
    return pl.BlockSpec(a.shape, lambda i: (0, 0))            # all weights are 2-D


def project_tanh(e1, w, b):
    B, H, W, C = e1.shape
    hid = w.shape[-1]
    return pl.pallas_call(
        _project_kernel,
        out_shape=jax.ShapeDtypeStruct((B, H, W, hid), jnp.bfloat16),
        grid=(B,),
        in_specs=[pl.BlockSpec((1, H, W, C), lambda i: (i, 0, 0, 0)),
                  _w_spec(w), _w_spec(b)],
        out_specs=pl.BlockSpec((1, H, W, hid), lambda i: (i, 0, 0, 0)),
        compiler_params=_CPARAMS,
    )(e1, w, b)


def enc_gru_step(binstate, ctx, h, p, *, L, min_d, max_d):
    B, H, W, hid = h.shape
    N = H * W
    kern = functools.partial(_enc_gru_kernel, H=H, W=W, L=L, hid=hid,
                             min_d=min_d, max_d=max_d)
    names = ["convd1", "convd2", "convd3", "convd4",
             "convzr1", "convq1", "convzr2", "convq2"]
    wb, w_specs = [], []
    for n in names:
        wb += [p[n]["w"], p[n]["b"]]
        w_specs += [_w_spec(p[n]["w"]), _w_spec(p[n]["b"])]
    return pl.pallas_call(
        kern,
        out_shape=jax.ShapeDtypeStruct((B, H, W, hid), jnp.bfloat16),
        grid=(B,),
        in_specs=[pl.BlockSpec((1, 2, N), lambda i: (i, 0, 0)),
                  pl.BlockSpec((1, H, W, ctx.shape[-1]), lambda i: (i, 0, 0, 0)),
                  pl.BlockSpec((1, H, W, hid), lambda i: (i, 0, 0, 0))] + w_specs,
        out_specs=pl.BlockSpec((1, H, W, hid), lambda i: (i, 0, 0, 0)),
        compiler_params=_CPARAMS,
    )(binstate, ctx, h, *wb)


def phead_bin_upsample(h, binstate, p, mh, mwt, *, L, min_d, max_d):
    B, H, W, hid = h.shape
    N = H * W
    kern = functools.partial(_phead_bin_up_kernel, H=H, W=W, L=L,
                             min_d=min_d, max_d=max_d)
    return pl.pallas_call(
        kern,
        out_shape=(jax.ShapeDtypeStruct((B, 3, OH, OW), jnp.float32),
                   jax.ShapeDtypeStruct((B, 2, N), jnp.float32)),
        grid=(B,),
        in_specs=[pl.BlockSpec((1, H, W, hid), lambda i: (i, 0, 0, 0)),
                  pl.BlockSpec((1, 2, N), lambda i: (i, 0, 0)),
                  _w_spec(p["ph1"]["w"]), _w_spec(p["ph1"]["b"]),
                  _w_spec(p["ph2"]["w"]), _w_spec(p["ph2"]["b"]),
                  _w_spec(mh), _w_spec(mwt)],
        out_specs=(pl.BlockSpec((1, 3, OH, OW), lambda i: (i, 0, 0, 0)),
                   pl.BlockSpec((1, 2, N), lambda i: (i, 0, 0))),
        compiler_params=_CPARAMS,
    )(h, binstate, p["ph1"]["w"], p["ph1"]["b"], p["ph2"]["w"], p["ph2"]["b"],
      mh, mwt)


# ----------------------------------------------------------------------------
# Module glue (parameter setup, bilinear matrices, refinement loop).
# ----------------------------------------------------------------------------
def _bilinear_matrix(n_in, n_out):
    """Interpolation matrix matching F.interpolate(bilinear, align_corners=False)."""
    dst = jnp.arange(n_out, dtype=jnp.float32)
    src = jnp.clip((dst + 0.5) * (n_in / n_out) - 0.5, 0.0, None)
    i0 = jnp.clip(jnp.floor(src).astype(jnp.int32), 0, n_in - 1)
    i1 = jnp.minimum(i0 + 1, n_in - 1)
    w1 = src - i0.astype(jnp.float32)
    w0 = 1.0 - w1
    return (w0[:, None] * jax.nn.one_hot(i0, n_in, dtype=jnp.float32)
            + w1[:, None] * jax.nn.one_hot(i1, n_in, dtype=jnp.float32))


def init_params(key, *, v_dim0, hidden_dim, context_dim, depth_num):
    keys = iter(jax.random.split(key, 32))

    def conv_p(kh, kw, cin, cout):
        k1, k2 = jax.random.split(next(keys))
        w = (jax.random.normal(k1, (kh * kw * cin, cout), jnp.float32)
             / jnp.sqrt(kh * kw * cin)).astype(jnp.bfloat16)
        b = 0.01 * jax.random.normal(k2, (1, cout), jnp.float32)
        return {"w": w, "b": b}

    out_chs = hidden_dim * 2                          # ProjectionInputDepth.out_chs
    gru_in = hidden_dim + out_chs + context_dim       # hidden + encoder.out + context
    return {
        "project": conv_p(3, 3, v_dim0, hidden_dim),          # Projection
        "convd1": conv_p(7, 7, depth_num, hidden_dim),        # ProjectionInputDepth
        "convd2": conv_p(3, 3, hidden_dim, hidden_dim),
        "convd3": conv_p(3, 3, hidden_dim, hidden_dim),
        "convd4": conv_p(3, 3, hidden_dim, out_chs),
        "convzr1": conv_p(1, 5, gru_in, 2 * hidden_dim),      # convz1+convr1 fused
        "convq1": conv_p(1, 5, gru_in, hidden_dim),
        "convzr2": conv_p(5, 1, gru_in, 2 * hidden_dim),      # convz2+convr2 fused
        "convq2": conv_p(5, 1, gru_in, hidden_dim),
        "ph1": conv_p(3, 3, hidden_dim, hidden_dim),          # PHead
        "ph2": conv_p(3, 3, hidden_dim, depth_num),
    }


def newcrf_depth_update_forward(params, e1, context, *, seq_len, depth_num,
                                min_depth, max_depth):
    """e1: [B, v_dim0, H, W], context: [B, context_dim, H, W]  (NCHW, float32).
       Returns three lists of [B, 1, 384, 768] maps (depth_r, depth_c, uncertainty)."""
    e1 = jnp.transpose(e1, (0, 2, 3, 1)).astype(jnp.bfloat16)          # -> NHWC
    ctx = jnp.transpose(context, (0, 2, 3, 1)).astype(jnp.bfloat16)    # -> NHWC
    B, H, W, _ = e1.shape
    N = H * W

    mh = _bilinear_matrix(H, OH)           # (OH, H)
    mwt = _bilinear_matrix(W, OW).T        # (W, OW)

    # gru_hidden = tanh(self.project(e1))
    h = project_tanh(e1, params["project"]["w"], params["project"]["b"])

    # initial bin state (start, step) == uniform bins over [min_depth, max_depth]
    interval = (max_depth - min_depth) / depth_num
    binstate = jnp.concatenate(
        [jnp.full((B, 1, N), min_depth, jnp.float32),
         jnp.full((B, 1, N), interval, jnp.float32)], axis=1)

    pred_r, pred_c, unc_maps = [], [], []
    for _ in range(seq_len):
        h = enc_gru_step(binstate, ctx, h, params, L=depth_num,
                         min_d=min_depth, max_d=max_depth)
        maps, binstate = phead_bin_upsample(h, binstate, params, mh, mwt,
                                            L=depth_num, min_d=min_depth,
                                            max_d=max_depth)
        pred_r.append(maps[:, 0:1])        # [B, 1, 384, 768]
        pred_c.append(maps[:, 1:2])
        unc_maps.append(maps[:, 2:3])
    return pred_r, pred_c, unc_maps


if __name__ == "__main__":
    key = jax.random.PRNGKey(0)
    B, H, W = 2, 16, 16
    V_DIM0, HIDDEN, CONTEXT = 16, 32, 32       # small stand-ins for 64 / 128 / 128 (vitl)
    DEPTH_NUM, MIN_D, MAX_D = 16, 0.1, 100.0
    SEQ_LEN = 3                                # max_tree_depth (epoch==0 / step<80 branch)

    kp, ke, kc = jax.random.split(key, 3)
    params = init_params(kp, v_dim0=V_DIM0, hidden_dim=HIDDEN,
                         context_dim=CONTEXT, depth_num=DEPTH_NUM)
    e1 = jax.random.normal(ke, (B, V_DIM0, H, W), jnp.float32)         # NCHW
    context = jax.random.normal(kc, (B, CONTEXT, H, W), jnp.float32)   # NCHW

    rs, cs, us = newcrf_depth_update_forward(
        params, e1, context, seq_len=SEQ_LEN, depth_num=DEPTH_NUM,
        min_depth=MIN_D, max_depth=MAX_D)
    jax.block_until_ready((rs, cs, us))

    assert len(rs) == len(cs) == len(us) == SEQ_LEN
    assert rs[0].shape == (B, 1, OH, OW)
    assert bool(jnp.all(jnp.isfinite(rs[-1]))) and bool(jnp.all(us[-1] >= 0.0))
    print("KERNEL_OK")
</pallas_src>

<mosaic_0001>
module attributes {stable_mosaic.version = 11 : i64} {
  func.func @_project_kernel(%arg0: i32, %arg1: memref<1x16x16x16xbf16, #tpu.memory_space<vmem>>, %arg2: memref<144x32xbf16, #tpu.memory_space<vmem>>, %arg3: memref<1x32xf32, #tpu.memory_space<vmem>>, %arg4: memref<1x16x16x32xbf16, #tpu.memory_space<vmem>>) attributes {dimension_semantics = [#tpu.dimension_semantics<parallel>], iteration_bounds = array<i64: 2>, scalar_prefetch = 0 : i64, scratch_operands = 0 : i64, tpu.core_type = #tpu.core_type<tc>, window_params = [{transform_indices = @transform_0, window_bounds = array<i64: 1, 16, 16, 16>}, {pipeline_mode = #tpu.pipeline_mode<synchronous>, transform_indices = @transform_1, window_bounds = array<i64: 144, 32>}, {pipeline_mode = #tpu.pipeline_mode<synchronous>, transform_indices = @transform_2, window_bounds = array<i64: 1, 32>}, {transform_indices = @transform_3, window_bounds = array<i64: 1, 16, 16, 32>}]} {
    %c0 = arith.constant 0 : index
    %c0_0 = arith.constant 0 : index
    %c0_1 = arith.constant 0 : index
    %c0_2 = arith.constant 0 : index
    %0 = vector.load %arg1[%c0, %c0_0, %c0_1, %c0_2] : memref<1x16x16x16xbf16, #tpu.memory_space<vmem>>, vector<1x16x16x16xbf16>
    %1 = vector.shape_cast %0 : vector<1x16x16x16xbf16> to vector<16x16x16xbf16>
    %2 = arith.extf %1 : vector<16x16x16xbf16> to vector<16x16x16xf32>
    %c0_3 = arith.constant 0 : index
    %c0_4 = arith.constant 0 : index
    %3 = vector.load %arg2[%c0_3, %c0_4] : memref<144x32xbf16, #tpu.memory_space<vmem>>, vector<144x32xbf16>
    %c0_5 = arith.constant 0 : index
    %c0_6 = arith.constant 0 : index
    %4 = vector.load %arg3[%c0_5, %c0_6] : memref<1x32xf32, #tpu.memory_space<vmem>>, vector<1x32xf32>
    %cst = arith.constant 0.000000e+00 : f32
    %5 = vector.broadcast %cst : f32 to vector<16x1x16xf32>
    %6 = tpu.concatenate %5, %2, %5 in 1 : vector<16x1x16xf32>, vector<16x16x16xf32>, vector<16x1x16xf32> -> vector<16x18x16xf32>
    %cst_7 = arith.constant 0.000000e+00 : f32
    %7 = vector.broadcast %cst_7 : f32 to vector<1x18x16xf32>
    %8 = tpu.concatenate %7, %6, %7 in 0 : vector<1x18x16xf32>, vector<16x18x16xf32>, vector<1x18x16xf32> -> vector<18x18x16xf32>
    %9 = vector.extract_strided_slice %8 {offsets = [0, 0, 0], sizes = [16, 16, 16], strides = [1, 1, 1]} : vector<18x18x16xf32> to vector<16x16x16xf32>
    %10 = vector.extract_strided_slice %8 {offsets = [0, 1, 0], sizes = [16, 16, 16], strides = [1, 1, 1]} : vector<18x18x16xf32> to vector<16x16x16xf32>
    %11 = vector.extract_strided_slice %8 {offsets = [0, 2, 0], sizes = [16, 16, 16], strides = [1, 1, 1]} : vector<18x18x16xf32> to vector<16x16x16xf32>
    %12 = vector.extract_strided_slice %8 {offsets = [1, 0, 0], sizes = [16, 16, 16], strides = [1, 1, 1]} : vector<18x18x16xf32> to vector<16x16x16xf32>
    %13 = vector.extract_strided_slice %8 {offsets = [1, 1, 0], sizes = [16, 16, 16], strides = [1, 1, 1]} : vector<18x18x16xf32> to vector<16x16x16xf32>
    %14 = vector.extract_strided_slice %8 {offsets = [1, 2, 0], sizes = [16, 16, 16], strides = [1, 1, 1]} : vector<18x18x16xf32> to vector<16x16x16xf32>
    %15 = vector.extract_strided_slice %8 {offsets = [2, 0, 0], sizes = [16, 16, 16], strides = [1, 1, 1]} : vector<18x18x16xf32> to vector<16x16x16xf32>
    %16 = vector.extract_strided_slice %8 {offsets = [2, 1, 0], sizes = [16, 16, 16], strides = [1, 1, 1]} : vector<18x18x16xf32> to vector<16x16x16xf32>
    %17 = vector.extract_strided_slice %8 {offsets = [2, 2, 0], sizes = [16, 16, 16], strides = [1, 1, 1]} : vector<18x18x16xf32> to vector<16x16x16xf32>
    %18 = tpu.concatenate %9, %10, %11, %12, %13, %14, %15, %16, %17 in 2 : vector<16x16x16xf32>, vector<16x16x16xf32>, vector<16x16x16xf32>, vector<16x16x16xf32>, vector<16x16x16xf32>, vector<16x16x16xf32>, vector<16x16x16xf32>, vector<16x16x16xf32>, vector<16x16x16xf32> -> vector<16x16x144xf32>
    %19 = vector.shape_cast %18 : vector<16x16x144xf32> to vector<256x144xf32>
    %20 = arith.truncf %19 : vector<256x144xf32> to vector<256x144xbf16>
    %cst_8 = arith.constant dense<0.000000e+00> : vector<256x32xf32>
    %21 = tpu.matmul %20, %3, %cst_8 {dimension_numbers = #tpu.dot_dimension_numbers<[1], [0], [0], [1], [0, 0, 1, 1], [], []>} : vector<256x144xbf16>, vector<144x32xbf16>, vector<256x32xf32> -> vector<256x32xf32>
    %22 = vector.broadcast %4 : vector<1x32xf32> to vector<256x32xf32>
    %23 = arith.addf %21, %22 : vector<256x32xf32>
    %24 = math.tanh %23 : vector<256x32xf32>
    %25 = vector.shape_cast %24 : vector<256x32xf32> to vector<16x16x32xf32>
    %26 = arith.truncf %25 : vector<16x16x32xf32> to vector<16x16x32xbf16>
    %c0_9 = arith.constant 0 : index
    %c0_10 = arith.constant 0 : index
    %c0_11 = arith.constant 0 : index
    %c0_12 = arith.constant 0 : index
    %27 = vector.load %arg4[%c0_9, %c0_10, %c0_11, %c0_12] : memref<1x16x16x32xbf16, #tpu.memory_space<vmem>>, vector<1x16x16x32xbf16>
    %28 = vector.shape_cast %27 : vector<1x16x16x32xbf16> to vector<16x16x32xbf16>
    %29 = vector.shape_cast %26 : vector<16x16x32xbf16> to vector<1x16x16x32xbf16>
    tpu.vector_store %arg4[%c0_9, %c0_10, %c0_11, %c0_12], %29 {strides = array<i32>} : memref<1x16x16x32xbf16, #tpu.memory_space<vmem>>, vector<1x16x16x32xbf16>,
    return
  }
  func.func @transform_0(%arg0: i32) -> (i32, i32, i32, i32) {
    %c0_i32 = arith.constant 0 : i32
    %c0_i32_0 = arith.constant 0 : i32
    %c0_i32_1 = arith.constant 0 : i32
    %c0_i32_2 = arith.constant 0 : i32
    return %arg0, %c0_i32, %c0_i32_0, %c0_i32_1 : i32, i32, i32, i32
  }
  func.func @transform_1(%arg0: i32) -> (i32, i32) {
    %c0_i32 = arith.constant 0 : i32
    %c0_i32_0 = arith.constant 0 : i32
    %c0_i32_1 = arith.constant 0 : i32
    return %c0_i32, %c0_i32_0 : i32, i32
  }
  func.func @transform_2(%arg0: i32) -> (i32, i32) {
    %c0_i32 = arith.constant 0 : i32
    %c0_i32_0 = arith.constant 0 : i32
    %c0_i32_1 = arith.constant 0 : i32
    return %c0_i32, %c0_i32_0 : i32, i32
  }
  func.func @transform_3(%arg0: i32) -> (i32, i32, i32, i32) {
    %c0_i32 = arith.constant 0 : i32
    %c0_i32_0 = arith.constant 0 : i32
    %c0_i32_1 = arith.constant 0 : i32
    %c0_i32_2 = arith.constant 0 : i32
    return %arg0, %c0_i32, %c0_i32_0, %c0_i32_1 : i32, i32, i32, i32
  }
}

</mosaic_0001>

<llo_original>
// kernel: tpu_custom_call.1
$region0: #{tpu_custom_call.1}
  #allocation0 [shape = 'u32[]', space=smem, size = 0x4, offset = 0x4, fixed_abs, tag = 'smem constant byte address 0x4 - core index']
  #allocation1 [shape = 'u32[144,128]{1,0:T(1,128)}', space=vmem, size = 0x12000, scoped, tag = 'internal scratch']
  %s0 = inlined_call_operand.hbm [shape: bf16[2,16,16,16], index: 0, kind: input, shape index: {}]
  %s1 = inlined_call_operand.vmem [shape: bf16[144,32], index: 1, kind: input, shape index: {}]
  %s2 = inlined_call_operand.vmem [shape: f32[1,32], index: 2, kind: input, shape index: {}]
  %s3 = inlined_call_operand.hbm [shape: bf16[2,16,16,32], index: 3, kind: output, shape index: {}]
  %s4 = sld [smem:[#allocation0]]
  $region49: #{tpu_custom_call.1} parent=0
    _
  %s6 = ssub.s32 1, %s4
  %s7 = scalar_select 0, %s6, %s4
  $region1: #{tpu_custom_call.1} parent=0
    #allocation2 [shape = 'u8[131072]{0}', space=vmem, size = 0x20000, scoped, tag = 'input window, operand 0']
    #allocation3 [shape = 's32[2]{0}', space=sflag, size = 0x8, scoped, tag = 'scoped memory for tpu_custom_call.1']
    #allocation4 [shape = 's32[2]{0}', space=sflag, size = 0x8, scoped, tag = 'scoped memory for tpu_custom_call.1']
    #allocation5 [shape = 'u8[131072]{0}', space=vmem, size = 0x20000, scoped, tag = 'output window, operand 0']
    %8 = vsyncpa [#allocation3], 0
    %s9 = scalar_lea.sflag [#allocation3], 1
    %10 = vsyncpa %s9, 0
    %11 = vsyncpa [#allocation4], 0
    %s12 = scalar_lea.sflag [#allocation4], 1
    %13 = vsyncpa %s12, 0
    loop: start=0, step=1, limit=4
    $region2: #{tpu_custom_call.1} parent=1 // loop_pre_header
      _
    $region3: #{tpu_custom_call.1} parent=1 // loop_header
      %s15 = sphi 0, %s19
      %p16 = scmp.ge.s32.totalorder %s15, 4
      %s25 = sphi 0, %s27
      %s28 = sphi 0, %s25
      %s29 = sphi 0, %s28
      %s45 = sphi 0, %s29
      %s49 = sphi 0, %s49
      %s51 = sphi 0, %s49
      %s52 = sphi 0, %s51
      %s66 = sphi 0, %s52
      %s70 = sphi 0, %s70
      %s72 = sphi 0, %s70
      %s73 = sphi 0, %s72
      %s87 = sphi 0, %s73
      %s93 = sphi 0, %s95
      %s96 = sphi 0, %s93
      %s97 = sphi 0, %s96
      %s113 = sphi 0, %s97
    $region4: #{tpu_custom_call.1} parent=1 // loop_header_branch
      %18 = sbr.rel (%p16) target = $region8
    $region5: #{tpu_custom_call.1} parent=1 // loop_body
      %s20 = ssub.s32 %s15, 1
      %s21 = ssub.s32 %s15, 2
      %s22 = sadd.s32 %s15, 1
      %s23 = ssub.s32 %s15, %s22
      %p24 = scmp.eq.s32.totalorder %s23, 0
      %s26 = sadd.s32 %s25, 1
      %s27 = scalar_select %p24, %s25, %s26
      %p30 = pneg %p24
      %p31 = scmp.eq.s32.totalorder %s15, 1
      %p32 = por %p30, %p31
      %p33 = scmp.ne.s32.totalorder %s25, %s28
      %p34 = scmp.eq.s32.totalorder %s15, 0
      %p35 = por %p33, %p34
      %p36 = scmp.ne.s32.totalorder %s25, %s28
      %p37 = scmp.eq.s32.totalorder %s20, 1
      %p38 = por %p36, %p37
      %p39 = scmp.ne.s32.totalorder %s28, %s29
      %p40 = scmp.eq.s32.totalorder %s20, 0
      %p41 = por %p39, %p40
      %p42 = scmp.ne.s32.totalorder %s28, %s29
      %p43 = scmp.eq.s32.totalorder %s21, 1
      %p44 = por %p42, %p43
      %p46 = scmp.ne.s32.totalorder %s29, %s45
      %p47 = scmp.eq.s32.totalorder %s21, 0
      %p48 = por %p46, %p47
      %s50 = sadd.s32 %s49, 1
      %p53 = scmp.eq.s32.totalorder %s15, 1
      %p54 = scmp.ne.s32.totalorder %s49, %s51
      %p55 = scmp.eq.s32.totalorder %s15, 0
      %p56 = por %p54, %p55
      %p57 = scmp.ne.s32.totalorder %s49, %s51
      %p58 = scmp.eq.s32.totalorder %s20, 1
      %p59 = por %p57, %p58
      %p60 = scmp.ne.s32.totalorder %s51, %s52
      %p61 = scmp.eq.s32.totalorder %s20, 0
      %p62 = por %p60, %p61
      %p63 = scmp.ne.s32.totalorder %s51, %s52
      %p64 = scmp.eq.s32.totalorder %s21, 1
      %p65 = por %p63, %p64
      %p67 = scmp.ne.s32.totalorder %s52, %s66
      %p68 = scmp.eq.s32.totalorder %s21, 0
      %p69 = por %p67, %p68
      %s71 = sadd.s32 %s70, 1
      %p74 = scmp.eq.s32.totalorder %s15, 1
      %p75 = scmp.ne.s32.totalorder %s70, %s72
      %p76 = scmp.eq.s32.totalorder %s15, 0
      %p77 = por %p75, %p76
      %p78 = scmp.ne.s32.totalorder %s70, %s72
      %p79 = scmp.eq.s32.totalorder %s20, 1
      %p80 = por %p78, %p79
      %p81 = scmp.ne.s32.totalorder %s72, %s73
      %p82 = scmp.eq.s32.totalorder %s20, 0
      %p83 = por %p81, %p82
      %p84 = scmp.ne.s32.totalorder %s72, %s73
      %p85 = scmp.eq.s32.totalorder %s21, 1
      %p86 = por %p84, %p85
      %p88 = scmp.ne.s32.totalorder %s73, %s87
      %p89 = scmp.eq.s32.totalorder %s21, 0
      %p90 = por %p88, %p89
      %s91 = ssub.s32 %s15, %s22
      %p92 = scmp.eq.s32.totalorder %s91, 0
      %s94 = sadd.s32 %s93, 1
      %s95 = scalar_select %p92, %s93, %s94
      %p98 = pneg %p92
      %p99 = scmp.eq.s32.totalorder %s15, 1
      %p100 = por %p98, %p99
      %p101 = scmp.ne.s32.totalorder %s93, %s96
      %p102 = scmp.eq.s32.totalorder %s15, 0
      %p103 = por %p101, %p102
      %p104 = scmp.ne.s32.totalorder %s93, %s96
      %p105 = scmp.eq.s32.totalorder %s20, 1
      %p106 = por %p104, %p105
      %p107 = scmp.ne.s32.totalorder %s96, %s97
      %p108 = scmp.eq.s32.totalorder %s20, 0
      %p109 = por %p107, %p108
      %p110 = scmp.ne.s32.totalorder %s96, %s97
      %p111 = scmp.eq.s32.totalorder %s21, 1
      %p112 = por %p110, %p111
      %p114 = scmp.ne.s32.totalorder %s97, %s113
      %p115 = scmp.eq.s32.totalorder %s21, 0
      %p116 = por %p114, %p115
      %p117 = scmp.le.s32.totalorder 1, %s15
      %p118 = scmp.lt.s32.totalorder %s15, 3
      %p119 = pnand %p117, %p118
      %p120 = pneg %p119
      // Predicated region
      $region9: #{tpu_custom_call.1} parent=5 // pred_check
        _
      $region10: #{tpu_custom_call.1} parent=5 // pred_check_branch
        %122 = sbr.rel (%p119) target = $region12
      $region11: #{tpu_custom_call.1} parent=5 // pred_region
        %s123 = ssub.s32 %s15, 1
        // Predicated region
        $region13: #{tpu_custom_call.1} parent=11 // pred_check
          %p124 = pneg %p62
        $region14: #{tpu_custom_call.1} parent=11 // pred_check_branch
          %126 = sbr.rel (%p124) target = $region16
        $region15: #{tpu_custom_call.1} parent=11 // pred_region
          _
        $region16: #{tpu_custom_call.1} parent=11 // pred_fallthru
          _
        // Predicated region
        $region17: #{tpu_custom_call.1} parent=11 // pred_check
          %p127 = pneg %p83
        $region18: #{tpu_custom_call.1} parent=11 // pred_check_branch
          %129 = sbr.rel (%p127) target = $region20
        $region19: #{tpu_custom_call.1} parent=11 // pred_region
          _
        $region20: #{tpu_custom_call.1} parent=11 // pred_fallthru
          _
      $region12: #{tpu_custom_call.1} parent=5 // pred_fallthru
        _
      %p130 = scmp.lt.s32.totalorder %s15, 2
      // Predicated region
      $region21: #{tpu_custom_call.1} parent=5 // pred_check
        %p131 = pneg %p130
      $region22: #{tpu_custom_call.1} parent=5 // pred_check_branch
        %133 = sbr.rel (%p131) target = $region24
      $region23: #{tpu_custom_call.1} parent=5 // pred_region
        // Predicated region
        $region25: #{tpu_custom_call.1} parent=23 // pred_check
          %p134 = pneg %p35
        $region26: #{tpu_custom_call.1} parent=23 // pred_check_branch
          %136 = sbr.rel (%p134) target = $region28
        $region27: #{tpu_custom_call.1} parent=23 // pred_region
          %s137 = sand.u32 %s25, 1
          %s138 = scalar_lea.sflag [#allocation3], %s137
          %s139 = sand.u32 %s25, 1
          %s140 = smul.addr %s139, 128
          %s141 = scalar_lea.vmem [#allocation2], %s140
          %s143 = ssub.s32 2048, 2048
          %144 = vsyncadd %s138, %s143
          %s145 = smul.addr %s15, 32
          %s146 = smul.addr %s145, 64
          %s147 = scalar_lea.hbm %s0, %s146
          %s148 = sshll.u32 %s141, 4
          %s149 = int_to_ptr.vmem [resolvable:$true] %s148
          %154 = dma.hbm_to_vmem [thread:$0]  %s147, 2048, %s149, %s138, 64, 64, 4
        $region28: #{tpu_custom_call.1} parent=23 // pred_fallthru
          _
      $region24: #{tpu_custom_call.1} parent=5 // pred_fallthru
        _
      %p155 = scmp.le.s32.totalorder 1, %s15
      %p156 = scmp.lt.s32.totalorder %s15, 3
      %p157 = pnand %p155, %p156
      %p158 = pneg %p157
      // Predicated region
      $region29: #{tpu_custom_call.1} parent=5 // pred_check
        _
      $region30: #{tpu_custom_call.1} parent=5 // pred_check_branch
        %160 = sbr.rel (%p157) target = $region32
      $region31: #{tpu_custom_call.1} parent=5 // pred_region
        %s161 = ssub.s32 %s15, 1
        %s162 = sand.u32 %s28, 1
        %s163 = scalar_lea.sflag [#allocation3], %s162
        %s164 = sand.u32 %s28, 1
        %s165 = smul.addr %s164, 128
        %s166 = scalar_lea.vmem [#allocation2], %s165
        // Predicated region
        $region33: #{tpu_custom_call.1} parent=31 // pred_check
          %p167 = pneg %p41
        $region34: #{tpu_custom_call.1} parent=31 // pred_check_branch
          %169 = sbr.rel (%p167) target = $region36
        $region35: #{tpu_custom_call.1} parent=31 // pred_region
          %170 = dma.done %s163, 2048
        $region36: #{tpu_custom_call.1} parent=31 // pred_fallthru
          _
        %s171 = sand.u32 %s28, 1
        %s172 = scalar_lea.sflag [#allocation3], %s171
        %s173 = sand.u32 %s28, 1
        %s174 = smul.addr %s173, 128
        %s175 = scalar_lea.vmem [#allocation2], %s174
        %p176 = pneg %p41
        %p177 = pneg %p38
        %p178 = pneg %p62
        %p179 = pneg %p59
        %p180 = pneg %p83
        %p181 = pneg %p80
        %p182 = pneg %p109
        %p183 = pneg %p106
        %s184 = sand.u32 %s96, 1
        %s185 = scalar_lea.sflag [#allocation4], %s184
        %s186 = sand.u32 %s96, 1
        %s187 = smul.addr %s186, 128
        %s188 = scalar_lea.vmem [#allocation5], %s187
        %v190 = vld [vmem:[%s166] sm:$0xf]
        %v191 = vld [vmem:[%s166 + $0x4] sm:$0xf]
        %v192 = vld [vmem:[%s166 + $0x8] sm:$0xf]
        %v193 = vld [vmem:[%s166 + $0xc] sm:$0xf]
        %v194 = vld [vmem:[%s166 + $0x10] sm:$0xf]
        %v195 = vld [vmem:[%s166 + $0x14] sm:$0xf]
        %v196 = vld [vmem:[%s166 + $0x18] sm:$0xf]
        %v197 = vld [vmem:[%s166 + $0x1c] sm:$0xf]
        %v198 = vld [vmem:[%s166 + $0x20] sm:$0xf]
        %v199 = vld [vmem:[%s166 + $0x24] sm:$0xf]
        %v200 = vld [vmem:[%s166 + $0x28] sm:$0xf]
        %v201 = vld [vmem:[%s166 + $0x2c] sm:$0xf]
        %v202 = vld [vmem:[%s166 + $0x30] sm:$0xf]
        %v203 = vld [vmem:[%s166 + $0x34] sm:$0xf]
        %v204 = vld [vmem:[%s166 + $0x38] sm:$0xf]
        %v205 = vld [vmem:[%s166 + $0x3c] sm:$0xf]
        %v206 = vld [vmem:[%s166 + $0x40] sm:$0xf]
        %v207 = vld [vmem:[%s166 + $0x44] sm:$0xf]
        %v208 = vld [vmem:[%s166 + $0x48] sm:$0xf]
        %v209 = vld [vmem:[%s166 + $0x4c] sm:$0xf]
        %v210 = vld [vmem:[%s166 + $0x50] sm:$0xf]
        %v211 = vld [vmem:[%s166 + $0x54] sm:$0xf]
        %v212 = vld [vmem:[%s166 + $0x58] sm:$0xf]
        %v213 = vld [vmem:[%s166 + $0x5c] sm:$0xf]
        %v214 = vld [vmem:[%s166 + $0x60] sm:$0xf]
        %v215 = vld [vmem:[%s166 + $0x64] sm:$0xf]
        %v216 = vld [vmem:[%s166 + $0x68] sm:$0xf]
        %v217 = vld [vmem:[%s166 + $0x6c] sm:$0xf]
        %v218 = vld [vmem:[%s166 + $0x70] sm:$0xf]
        %v219 = vld [vmem:[%s166 + $0x74] sm:$0xf]
        %v220 = vld [vmem:[%s166 + $0x78] sm:$0xf]
        %v221 = vld [vmem:[%s166 + $0x7c] sm:$0xf]
        %v222 = vunpack.c.l.bf16 %v190
        %v223 = vunpack.c.l.bf16 %v191
        %v224 = vunpack.c.l.bf16 %v192
        %v225 = vunpack.c.l.bf16 %v193
        %v226 = vunpack.c.l.bf16 %v194
        %v227 = vunpack.c.l.bf16 %v195
        %v228 = vunpack.c.l.bf16 %v196
        %v229 = vunpack.c.l.bf16 %v197
        %v230 = vunpack.c.l.bf16 %v198
        %v231 = vunpack.c.l.bf16 %v199
        %v232 = vunpack.c.l.bf16 %v200
        %v233 = vunpack.c.l.bf16 %v201
        %v234 = vunpack.c.l.bf16 %v202
        %v235 = vunpack.c.l.bf16 %v203
        %v236 = vunpack.c.l.bf16 %v204
        %v237 = vunpack.c.l.bf16 %v205
        %v238 = vunpack.c.l.bf16 %v206
        %v239 = vunpack.c.l.bf16 %v207
        %v240 = vunpack.c.l.bf16 %v208
        %v241 = vunpack.c.l.bf16 %v209
        %v242 = vunpack.c.l.bf16 %v210
        %v243 = vunpack.c.l.bf16 %v211
        %v244 = vunpack.c.l.bf16 %v212
        %v245 = vunpack.c.l.bf16 %v213
        %v246 = vunpack.c.l.bf16 %v214
        %v247 = vunpack.c.l.bf16 %v215
        %v248 = vunpack.c.l.bf16 %v216
        %v249 = vunpack.c.l.bf16 %v217
        %v250 = vunpack.c.l.bf16 %v218
        %v251 = vunpack.c.l.bf16 %v219
        %v252 = vunpack.c.l.bf16 %v220
        %v253 = vunpack.c.l.bf16 %v221
        %v254 = vld [vmem:[%s1] sm:$0xf]
        %v255 = vld [vmem:[%s1 + $0x4] sm:$0xf]
        %v256 = vld [vmem:[%s1 + $0x8] sm:$0xf]
        %v257 = vld [vmem:[%s1 + $0xc] sm:$0xf]
        %v258 = vld [vmem:[%s1 + $0x10] sm:$0xf]
        %v259 = vld [vmem:[%s1 + $0x14] sm:$0xf]
        %v260 = vld [vmem:[%s1 + $0x18] sm:$0xf]
        %v261 = vld [vmem:[%s1 + $0x1c] sm:$0xf]
        %v262 = vld [vmem:[%s1 + $0x20] sm:$0xf]
        %v263 = vld [vmem:[%s1 + $0x24] sm:$0xf]
        %v264 = vld [vmem:[%s1 + $0x28] sm:$0xf]
        %v265 = vld [vmem:[%s1 + $0x2c] sm:$0xf]
        %v266 = vld [vmem:[%s1 + $0x30] sm:$0xf]
        %v267 = vld [vmem:[%s1 + $0x34] sm:$0xf]
        %v268 = vld [vmem:[%s1 + $0x38] sm:$0xf]
        %v269 = vld [vmem:[%s1 + $0x3c] sm:$0xf]
        %v270 = vld [vmem:[%s1 + $0x40] sm:$0xf]
        %v271 = vld [vmem:[%s1 + $0x44] sm:$0xf]
        %v272 = vld [vmem:[%s2] sm:$0x1]
        %vm305 = vcmask 1040384
        %v306 = vrot.slane %v222, 7
        %v307 = vrot.slane %v223, 7
        %v308 = vsel %vm305, %v306, %v307
        %v309 = vrot.slane %v224, 7
        %v310 = vrot.slane %v225, 7
        %v311 = vsel %vm305, %v309, %v310
        %v312 = vrot.slane %v226, 7
        %v313 = vrot.slane %v227, 7
        %v314 = vsel %vm305, %v312, %v313
        %v315 = vrot.slane %v228, 7
        %v316 = vrot.slane %v229, 7
        %v317 = vsel %vm305, %v315, %v316
        %v318 = vrot.slane %v230, 7
        %v319 = vrot.slane %v231, 7
        %v320 = vsel %vm305, %v318, %v319
        %v321 = vrot.slane %v232, 7
        %v322 = vrot.slane %v233, 7
        %v323 = vsel %vm305, %v321, %v322
        %v324 = vrot.slane %v234, 7
        %v325 = vrot.slane %v235, 7
        %v326 = vsel %vm305, %v324, %v325
        %v327 = vrot.slane %v236, 7
        %v328 = vrot.slane %v237, 7
        %v329 = vsel %vm305, %v327, %v328
        %v330 = vrot.slane %v238, 7
        %v331 = vrot.slane %v239, 7
        %v332 = vsel %vm305, %v330, %v331
        %v333 = vrot.slane %v240, 7
        %v334 = vrot.slane %v241, 7
        %v335 = vsel %vm305, %v333, %v334
        %v336 = vrot.slane %v242, 7
        %v337 = vrot.slane %v243, 7
        %v338 = vsel %vm305, %v336, %v337
        %v339 = vrot.slane %v244, 7
        %v340 = vrot.slane %v245, 7
        %v341 = vsel %vm305, %v339, %v340
        %v342 = vrot.slane %v246, 7
        %v343 = vrot.slane %v247, 7
        %v344 = vsel %vm305, %v342, %v343
        %v345 = vrot.slane %v248, 7
        %v346 = vrot.slane %v249, 7
        %v347 = vsel %vm305, %v345, %v346
        %v348 = vrot.slane %v250, 7
        %v349 = vrot.slane %v251, 7
        %v350 = vsel %vm305, %v348, %v349
        %v351 = vrot.slane %v252, 7
        %v352 = vrot.slane %v253, 7
        %v353 = vsel %vm305, %v351, %v352
        %v401 = vsel %vm305, 0.0, %v306
        %v402 = vsel %vm305, 0.0, %v309
        %v403 = vsel %vm305, 0.0, %v312
        %v404 = vsel %vm305, 0.0, %v315
        %v405 = vsel %vm305, 0.0, %v318
        %v406 = vsel %vm305, 0.0, %v321
        %v407 = vsel %vm305, 0.0, %v324
        %v408 = vsel %vm305, 0.0, %v327
        %v409 = vsel %vm305, 0.0, %v330
        %v410 = vsel %vm305, 0.0, %v333
        %v411 = vsel %vm305, 0.0, %v336
        %v412 = vsel %vm305, 0.0, %v339
        %v413 = vsel %vm305, 0.0, %v342
        %v414 = vsel %vm305, 0.0, %v345
        %v415 = vsel %vm305, 0.0, %v348
        %v416 = vsel %vm305, 0.0, %v351
        %v417 = vsel %vm305, %v307, 0.0
        %v418 = vsel %vm305, %v310, 0.0
        %v419 = vsel %vm305, %v313, 0.0
        %v420 = vsel %vm305, %v316, 0.0
        %v421 = vsel %vm305, %v319, 0.0
        %v422 = vsel %vm305, %v322, 0.0
        %v423 = vsel %vm305, %v325, 0.0
        %v424 = vsel %vm305, %v328, 0.0
        %v425 = vsel %vm305, %v331, 0.0
        %v426 = vsel %vm305, %v334, 0.0
        %v427 = vsel %vm305, %v337, 0.0
        %v428 = vsel %vm305, %v340, 0.0
        %v429 = vsel %vm305, %v343, 0.0
        %v430 = vsel %vm305, %v346, 0.0
        %v431 = vsel %vm305, %v349, 0.0
        %v432 = vsel %vm305, %v352, 0.0
        %vm464 = vcmask 1046528
        %v465 = vrot.slane 0.0, 1
        %v466 = vsel %vm464, %v465, %v465
        %v467 = vrot.slane %v401, 1
        %v468 = vrot.slane %v308, 1
        %v469 = vsel %vm464, %v467, %v468
        %v470 = vrot.slane %v417, 1
        %v471 = vsel %vm464, %v468, %v470
        %v472 = vrot.slane %v402, 1
        %v473 = vrot.slane %v311, 1
        %v474 = vsel %vm464, %v472, %v473
        %v475 = vrot.slane %v418, 1
        %v476 = vsel %vm464, %v473, %v475
        %v477 = vrot.slane %v403, 1
        %v478 = vrot.slane %v314, 1
        %v479 = vsel %vm464, %v477, %v478
        %v480 = vrot.slane %v419, 1
        %v481 = vsel %vm464, %v478, %v480
        %v482 = vrot.slane %v404, 1
        %v483 = vrot.slane %v317, 1
        %v484 = vsel %vm464, %v482, %v483
        %v485 = vrot.slane %v420, 1
        %v486 = vsel %vm464, %v483, %v485
        %v487 = vrot.slane %v405, 1
        %v488 = vrot.slane %v320, 1
        %v489 = vsel %vm464, %v487, %v488
        %v490 = vrot.slane %v421, 1
        %v491 = vsel %vm464, %v488, %v490
        %v492 = vrot.slane %v406, 1
        %v493 = vrot.slane %v323, 1
        %v494 = vsel %vm464, %v492, %v493
        %v495 = vrot.slane %v422, 1
        %v496 = vsel %vm464, %v493, %v495
        %v497 = vrot.slane %v407, 1
        %v498 = vrot.slane %v326, 1
        %v499 = vsel %vm464, %v497, %v498
        %v500 = vrot.slane %v423, 1
        %v501 = vsel %vm464, %v498, %v500
        %v502 = vrot.slane %v408, 1
        %v503 = vrot.slane %v329, 1
        %v504 = vsel %vm464, %v502, %v503
        %v505 = vrot.slane %v424, 1
        %v506 = vsel %vm464, %v503, %v505
        %v507 = vrot.slane %v409, 1
        %v508 = vrot.slane %v332, 1
        %v509 = vsel %vm464, %v507, %v508
        %v510 = vrot.slane %v425, 1
        %v511 = vsel %vm464, %v508, %v510
        %v512 = vrot.slane %v410, 1
        %v513 = vrot.slane %v335, 1
        %v514 = vsel %vm464, %v512, %v513
        %v515 = vrot.slane %v426, 1
        %v516 = vsel %vm464, %v513, %v515
        %v517 = vrot.slane %v411, 1
        %v518 = vrot.slane %v338, 1
        %v519 = vsel %vm464, %v517, %v518
        %v520 = vrot.slane %v427, 1
        %v521 = vsel %vm464, %v518, %v520
        %v522 = vrot.slane %v412, 1
        %v523 = vrot.slane %v341, 1
        %v524 = vsel %vm464, %v522, %v523
        %v525 = vrot.slane %v428, 1
        %v526 = vsel %vm464, %v523, %v525
        %v527 = vrot.slane %v413, 1
        %v528 = vrot.slane %v344, 1
        %v529 = vsel %vm464, %v527, %v528
        %v530 = vrot.slane %v429, 1
        %v531 = vsel %vm464, %v528, %v530
        %v532 = vrot.slane %v414, 1
        %v533 = vrot.slane %v347, 1
        %v534 = vsel %vm464, %v532, %v533
        %v535 = vrot.slane %v430, 1
        %v536 = vsel %vm464, %v533, %v535
        %v537 = vrot.slane %v415, 1
        %v538 = vrot.slane %v350, 1
        %v539 = vsel %vm464, %v537, %v538
        %v540 = vrot.slane %v431, 1
        %v541 = vsel %vm464, %v538, %v540
        %542 = vrot.lane.b32.xlu0 %v466, 16
        %v543 = vpop.permute.xlu0 %542
        %544 = vrot.lane.b32.xlu0 %v469, 16
        %v545 = vpop.permute.xlu0 %544
        %546 = vrot.lane.b32.xlu0 %v471, 16
        %v547 = vpop.permute.xlu0 %546
        %548 = vrot.lane.b32.xlu0 %v474, 16
        %v549 = vpop.permute.xlu0 %548
        %550 = vrot.lane.b32.xlu0 %v476, 16
        %v551 = vpop.permute.xlu0 %550
        %552 = vrot.lane.b32.xlu0 %v479, 16
        %v553 = vpop.permute.xlu0 %552
        %554 = vrot.lane.b32.xlu0 %v481, 16
        %v555 = vpop.permute.xlu0 %554
        %556 = vrot.lane.b32.xlu0 %v484, 16
        %v557 = vpop.permute.xlu0 %556
        %558 = vrot.lane.b32.xlu0 %v486, 16
        %v559 = vpop.permute.xlu0 %558
        %560 = vrot.lane.b32.xlu0 %v489, 16
        %v561 = vpop.permute.xlu0 %560
        %562 = vrot.lane.b32.xlu0 %v491, 16
        %v563 = vpop.permute.xlu0 %562
        %564 = vrot.lane.b32.xlu0 %v494, 16
        %v565 = vpop.permute.xlu0 %564
        %566 = vrot.lane.b32.xlu0 %v496, 16
        %v567 = vpop.permute.xlu0 %566
        %568 = vrot.lane.b32.xlu0 %v499, 16
        %v569 = vpop.permute.xlu0 %568
        %570 = vrot.lane.b32.xlu0 %v501, 16
        %v571 = vpop.permute.xlu0 %570
        %572 = vrot.lane.b32.xlu0 %v504, 16
        %v573 = vpop.permute.xlu0 %572
        %574 = vrot.lane.b32.xlu0 %v506, 16
        %v575 = vpop.permute.xlu0 %574
        %576 = vrot.lane.b32.xlu0 %v509, 16
        %v577 = vpop.permute.xlu0 %576
        %578 = vrot.lane.b32.xlu0 %v511, 16
        %v579 = vpop.permute.xlu0 %578
        %580 = vrot.lane.b32.xlu0 %v514, 16
        %v581 = vpop.permute.xlu0 %580
        %582 = vrot.lane.b32.xlu0 %v516, 16
        %v583 = vpop.permute.xlu0 %582
        %584 = vrot.lane.b32.xlu0 %v519, 16
        %v585 = vpop.permute.xlu0 %584
        %586 = vrot.lane.b32.xlu0 %v521, 16
        %v587 = vpop.permute.xlu0 %586
        %588 = vrot.lane.b32.xlu0 %v524, 16
        %v589 = vpop.permute.xlu0 %588
        %590 = vrot.lane.b32.xlu0 %v526, 16
        %v591 = vpop.permute.xlu0 %590
        %592 = vrot.lane.b32.xlu0 %v529, 16
        %v593 = vpop.permute.xlu0 %592
        %594 = vrot.lane.b32.xlu0 %v531, 16
        %v595 = vpop.permute.xlu0 %594
        %596 = vrot.lane.b32.xlu0 %v534, 16
        %v597 = vpop.permute.xlu0 %596
        %598 = vrot.lane.b32.xlu0 %v536, 16
        %v599 = vpop.permute.xlu0 %598
        %600 = vrot.lane.b32.xlu0 %v539, 16
        %v601 = vpop.permute.xlu0 %600
        %602 = vrot.lane.b32.xlu0 %v541, 16
        %v603 = vpop.permute.xlu0 %602
        %vm635 = vcmask 1045504
        %v636 = vrot.slane 0.0, 2
        %v637 = vsel %vm635, %v636, %v636
        %v638 = vrot.slane %v401, 2
        %v639 = vrot.slane %v308, 2
        %v640 = vsel %vm635, %v638, %v639
        %v641 = vrot.slane %v417, 2
        %v642 = vsel %vm635, %v639, %v641
        %v643 = vrot.slane %v402, 2
        %v644 = vrot.slane %v311, 2
        %v645 = vsel %vm635, %v643, %v644
        %v646 = vrot.slane %v418, 2
        %v647 = vsel %vm635, %v644, %v646
        %v648 = vrot.slane %v403, 2
        %v649 = vrot.slane %v314, 2
        %v650 = vsel %vm635, %v648, %v649
        %v651 = vrot.slane %v419, 2
        %v652 = vsel %vm635, %v649, %v651
        %v653 = vrot.slane %v404, 2
        %v654 = vrot.slane %v317, 2
        %v655 = vsel %vm635, %v653, %v654
        %v656 = vrot.slane %v420, 2
        %v657 = vsel %vm635, %v654, %v656
        %v658 = vrot.slane %v405, 2
        %v659 = vrot.slane %v320, 2
        %v660 = vsel %vm635, %v658, %v659
        %v661 = vrot.slane %v421, 2
        %v662 = vsel %vm635, %v659, %v661
        %v663 = vrot.slane %v406, 2
        %v664 = vrot.slane %v323, 2
        %v665 = vsel %vm635, %v663, %v664
        %v666 = vrot.slane %v422, 2
        %v667 = vsel %vm635, %v664, %v666
        %v668 = vrot.slane %v407, 2
        %v669 = vrot.slane %v326, 2
        %v670 = vsel %vm635, %v668, %v669
        %v671 = vrot.slane %v423, 2
        %v672 = vsel %vm635, %v669, %v671
        %v673 = vrot.slane %v408, 2
        %v674 = vrot.slane %v329, 2
        %v675 = vsel %vm635, %v673, %v674
        %v676 = vrot.slane %v424, 2
        %v677 = vsel %vm635, %v674, %v676
        %v678 = vrot.slane %v409, 2
        %v679 = vrot.slane %v332, 2
        %v680 = vsel %vm635, %v678, %v679
        %v681 = vrot.slane %v425, 2
        %v682 = vsel %vm635, %v679, %v681
        %v683 = vrot.slane %v410, 2
        %v684 = vrot.slane %v335, 2
        %v685 = vsel %vm635, %v683, %v684
        %v686 = vrot.slane %v426, 2
        %v687 = vsel %vm635, %v684, %v686
        %v688 = vrot.slane %v411, 2
        %v689 = vrot.slane %v338, 2
        %v690 = vsel %vm635, %v688, %v689
        %v691 = vrot.slane %v427, 2
        %v692 = vsel %vm635, %v689, %v691
        %v693 = vrot.slane %v412, 2
        %v694 = vrot.slane %v341, 2
        %v695 = vsel %vm635, %v693, %v694
        %v696 = vrot.slane %v428, 2
        %v697 = vsel %vm635, %v694, %v696
        %v698 = vrot.slane %v413, 2
        %v699 = vrot.slane %v344, 2
        %v700 = vsel %vm635, %v698, %v699
        %v701 = vrot.slane %v429, 2
        %v702 = vsel %vm635, %v699, %v701
        %v703 = vrot.slane %v414, 2
        %v704 = vrot.slane %v347, 2
        %v705 = vsel %vm635, %v703, %v704
        %v706 = vrot.slane %v430, 2
        %v707 = vsel %vm635, %v704, %v706
        %v708 = vrot.slane %v415, 2
        %v709 = vrot.slane %v350, 2
        %v710 = vsel %vm635, %v708, %v709
        %v711 = vrot.slane %v431, 2
        %v712 = vsel %vm635, %v709, %v711
        %713 = vrot.lane.b32.xlu0 %v637, 32
        %v714 = vpop.permute.xlu0 %713
        %715 = vrot.lane.b32.xlu0 %v640, 32
        %v716 = vpop.permute.xlu0 %715
        %717 = vrot.lane.b32.xlu0 %v642, 32
        %v718 = vpop.permute.xlu0 %717
        %719 = vrot.lane.b32.xlu0 %v645, 32
        %v720 = vpop.permute.xlu0 %719
        %721 = vrot.lane.b32.xlu0 %v647, 32
        %v722 = vpop.permute.xlu0 %721
        %723 = vrot.lane.b32.xlu0 %v650, 32
        %v724 = vpop.permute.xlu0 %723
        %725 = vrot.lane.b32.xlu0 %v652, 32
        %v726 = vpop.permute.xlu0 %725
        %727 = vrot.lane.b32.xlu0 %v655, 32
        %v728 = vpop.permute.xlu0 %727
        %729 = vrot.lane.b32.xlu0 %v657, 32
        %v730 = vpop.permute.xlu0 %729
        %731 = vrot.lane.b32.xlu0 %v660, 32
        %v732 = vpop.permute.xlu0 %731
        %733 = vrot.lane.b32.xlu0 %v662, 32
        %v734 = vpop.permute.xlu0 %733
        %735 = vrot.lane.b32.xlu0 %v665, 32
        %v736 = vpop.permute.xlu0 %735
        %737 = vrot.lane.b32.xlu0 %v667, 32
        %v738 = vpop.permute.xlu0 %737
        %739 = vrot.lane.b32.xlu0 %v670, 32
        %v740 = vpop.permute.xlu0 %739
        %741 = vrot.lane.b32.xlu0 %v672, 32
        %v742 = vpop.permute.xlu0 %741
        %743 = vrot.lane.b32.xlu0 %v675, 32
        %v744 = vpop.permute.xlu0 %743
        %745 = vrot.lane.b32.xlu0 %v677, 32
        %v746 = vpop.permute.xlu0 %745
        %747 = vrot.lane.b32.xlu0 %v680, 32
        %v748 = vpop.permute.xlu0 %747
        %749 = vrot.lane.b32.xlu0 %v682, 32
        %v750 = vpop.permute.xlu0 %749
        %751 = vrot.lane.b32.xlu0 %v685, 32
        %v752 = vpop.permute.xlu0 %751
        %753 = vrot.lane.b32.xlu0 %v687, 32
        %v754 = vpop.permute.xlu0 %753
        %755 = vrot.lane.b32.xlu0 %v690, 32
        %v756 = vpop.permute.xlu0 %755
        %757 = vrot.lane.b32.xlu0 %v692, 32
        %v758 = vpop.permute.xlu0 %757
        %759 = vrot.lane.b32.xlu0 %v695, 32
        %v760 = vpop.permute.xlu0 %759
        %761 = vrot.lane.b32.xlu0 %v697, 32
        %v762 = vpop.permute.xlu0 %761
        %763 = vrot.lane.b32.xlu0 %v700, 32
        %v764 = vpop.permute.xlu0 %763
        %765 = vrot.lane.b32.xlu0 %v702, 32
        %v766 = vpop.permute.xlu0 %765
        %767 = vrot.lane.b32.xlu0 %v705, 32
        %v768 = vpop.permute.xlu0 %767
        %769 = vrot.lane.b32.xlu0 %v707, 32
        %v770 = vpop.permute.xlu0 %769
        %771 = vrot.lane.b32.xlu0 %v710, 32
        %v772 = vpop.permute.xlu0 %771
        %773 = vrot.lane.b32.xlu0 %v712, 32
        %v774 = vpop.permute.xlu0 %773
        %807 = vrot.lane.b32.xlu0 %v401, 48
        %v808 = vpop.permute.xlu0 %807
        %809 = vrot.lane.b32.xlu0 %v308, 48
        %v810 = vpop.permute.xlu0 %809
        %811 = vrot.lane.b32.xlu0 %v402, 48
        %v812 = vpop.permute.xlu0 %811
        %813 = vrot.lane.b32.xlu0 %v311, 48
        %v814 = vpop.permute.xlu0 %813
        %815 = vrot.lane.b32.xlu0 %v403, 48
        %v816 = vpop.permute.xlu0 %815
        %817 = vrot.lane.b32.xlu0 %v314, 48
        %v818 = vpop.permute.xlu0 %817
        %819 = vrot.lane.b32.xlu0 %v404, 48
        %v820 = vpop.permute.xlu0 %819
        %821 = vrot.lane.b32.xlu0 %v317, 48
        %v822 = vpop.permute.xlu0 %821
        %823 = vrot.lane.b32.xlu0 %v405, 48
        %v824 = vpop.permute.xlu0 %823
        %825 = vrot.lane.b32.xlu0 %v320, 48
        %v826 = vpop.permute.xlu0 %825
        %827 = vrot.lane.b32.xlu0 %v406, 48
        %v828 = vpop.permute.xlu0 %827
        %829 = vrot.lane.b32.xlu0 %v323, 48
        %v830 = vpop.permute.xlu0 %829
        %831 = vrot.lane.b32.xlu0 %v407, 48
        %v832 = vpop.permute.xlu0 %831
        %833 = vrot.lane.b32.xlu0 %v326, 48
        %v834 = vpop.permute.xlu0 %833
        %835 = vrot.lane.b32.xlu0 %v408, 48
        %v836 = vpop.permute.xlu0 %835
        %837 = vrot.lane.b32.xlu0 %v329, 48
        %v838 = vpop.permute.xlu0 %837
        %839 = vrot.lane.b32.xlu0 %v409, 48
        %v840 = vpop.permute.xlu0 %839
        %841 = vrot.lane.b32.xlu0 %v332, 48
        %v842 = vpop.permute.xlu0 %841
        %843 = vrot.lane.b32.xlu0 %v410, 48
        %v844 = vpop.permute.xlu0 %843
        %845 = vrot.lane.b32.xlu0 %v335, 48
        %v846 = vpop.permute.xlu0 %845
        %847 = vrot.lane.b32.xlu0 %v411, 48
        %v848 = vpop.permute.xlu0 %847
        %849 = vrot.lane.b32.xlu0 %v338, 48
        %v850 = vpop.permute.xlu0 %849
        %851 = vrot.lane.b32.xlu0 %v412, 48
        %v852 = vpop.permute.xlu0 %851
        %853 = vrot.lane.b32.xlu0 %v341, 48
        %v854 = vpop.permute.xlu0 %853
        %855 = vrot.lane.b32.xlu0 %v413, 48
        %v856 = vpop.permute.xlu0 %855
        %857 = vrot.lane.b32.xlu0 %v344, 48
        %v858 = vpop.permute.xlu0 %857
        %859 = vrot.lane.b32.xlu0 %v414, 48
        %v860 = vpop.permute.xlu0 %859
        %861 = vrot.lane.b32.xlu0 %v347, 48
        %v862 = vpop.permute.xlu0 %861
        %863 = vrot.lane.b32.xlu0 %v415, 48
        %v864 = vpop.permute.xlu0 %863
        %865 = vrot.lane.b32.xlu0 %v350, 48
        %v866 = vpop.permute.xlu0 %865
        %867 = vrot.lane.b32.xlu0 %v416, 48
        %v868 = vpop.permute.xlu0 %867
        %869 = vrot.lane.b32.xlu0 %v353, 48
        %v870 = vpop.permute.xlu0 %869
        %v904 = vrot.slane %v416, 1
        %v905 = vrot.slane %v353, 1
        %v906 = vsel %vm464, %v904, %v905
        %v907 = vrot.slane %v432, 1
        %v908 = vsel %vm464, %v905, %v907
        %909 = vrot.lane.b32.xlu0 %v469, 64
        %v910 = vpop.permute.xlu0 %909
        %911 = vrot.lane.b32.xlu0 %v471, 64
        %v912 = vpop.permute.xlu0 %911
        %913 = vrot.lane.b32.xlu0 %v474, 64
        %v914 = vpop.permute.xlu0 %913
        %915 = vrot.lane.b32.xlu0 %v476, 64
        %v916 = vpop.permute.xlu0 %915
        %917 = vrot.lane.b32.xlu0 %v479, 64
        %v918 = vpop.permute.xlu0 %917
        %919 = vrot.lane.b32.xlu0 %v481, 64
        %v920 = vpop.permute.xlu0 %919
        %921 = vrot.lane.b32.xlu0 %v484, 64
        %v922 = vpop.permute.xlu0 %921
        %923 = vrot.lane.b32.xlu0 %v486, 64
        %v924 = vpop.permute.xlu0 %923
        %925 = vrot.lane.b32.xlu0 %v489, 64
        %v926 = vpop.permute.xlu0 %925
        %927 = vrot.lane.b32.xlu0 %v491, 64
        %v928 = vpop.permute.xlu0 %927
        %929 = vrot.lane.b32.xlu0 %v494, 64
        %v930 = vpop.permute.xlu0 %929
        %931 = vrot.lane.b32.xlu0 %v496, 64
        %v932 = vpop.permute.xlu0 %931
        %933 = vrot.lane.b32.xlu0 %v499, 64
        %v934 = vpop.permute.xlu0 %933
        %935 = vrot.lane.b32.xlu0 %v501, 64
        %v936 = vpop.permute.xlu0 %935
        %937 = vrot.lane.b32.xlu0 %v504, 64
        %v938 = vpop.permute.xlu0 %937
        %939 = vrot.lane.b32.xlu0 %v506, 64
        %v940 = vpop.permute.xlu0 %939
        %941 = vrot.lane.b32.xlu0 %v509, 64
        %v942 = vpop.permute.xlu0 %941
        %943 = vrot.lane.b32.xlu0 %v511, 64
        %v944 = vpop.permute.xlu0 %943
        %945 = vrot.lane.b32.xlu0 %v514, 64
        %v946 = vpop.permute.xlu0 %945
        %947 = vrot.lane.b32.xlu0 %v516, 64
        %v948 = vpop.permute.xlu0 %947
        %949 = vrot.lane.b32.xlu0 %v519, 64
        %v950 = vpop.permute.xlu0 %949
        %951 = vrot.lane.b32.xlu0 %v521, 64
        %v952 = vpop.permute.xlu0 %951
        %953 = vrot.lane.b32.xlu0 %v524, 64
        %v954 = vpop.permute.xlu0 %953
        %955 = vrot.lane.b32.xlu0 %v526, 64
        %v956 = vpop.permute.xlu0 %955
        %957 = vrot.lane.b32.xlu0 %v529, 64
        %v958 = vpop.permute.xlu0 %957
        %959 = vrot.lane.b32.xlu0 %v531, 64
        %v960 = vpop.permute.xlu0 %959
        %961 = vrot.lane.b32.xlu0 %v534, 64
        %v962 = vpop.permute.xlu0 %961
        %963 = vrot.lane.b32.xlu0 %v536, 64
        %v964 = vpop.permute.xlu0 %963
        %965 = vrot.lane.b32.xlu0 %v539, 64
        %v966 = vpop.permute.xlu0 %965
        %967 = vrot.lane.b32.xlu0 %v541, 64
        %v968 = vpop.permute.xlu0 %967
        %969 = vrot.lane.b32.xlu0 %v906, 64
        %v970 = vpop.permute.xlu0 %969
        %971 = vrot.lane.b32.xlu0 %v908, 64
        %v972 = vpop.permute.xlu0 %971
        %v1005 = vrot.slane %v416, 2
        %v1006 = vrot.slane %v353, 2
        %v1007 = vsel %vm635, %v1005, %v1006
        %v1008 = vrot.slane %v432, 2
        %v1009 = vsel %vm635, %v1006, %v1008
        %1010 = vrot.lane.b32.xlu0 %v640, 80
        %v1011 = vpop.permute.xlu0 %1010
        %1012 = vrot.lane.b32.xlu0 %v642, 80
        %v1013 = vpop.permute.xlu0 %1012
        %1014 = vrot.lane.b32.xlu0 %v645, 80
        %v1015 = vpop.permute.xlu0 %1014
        %1016 = vrot.lane.b32.xlu0 %v647, 80
        %v1017 = vpop.permute.xlu0 %1016
        %1018 = vrot.lane.b32.xlu0 %v650, 80
        %v1019 = vpop.permute.xlu0 %1018
        %1020 = vrot.lane.b32.xlu0 %v652, 80
        %v1021 = vpop.permute.xlu0 %1020
        %1022 = vrot.lane.b32.xlu0 %v655, 80
        %v1023 = vpop.permute.xlu0 %1022
        %1024 = vrot.lane.b32.xlu0 %v657, 80
        %v1025 = vpop.permute.xlu0 %1024
        %1026 = vrot.lane.b32.xlu0 %v660, 80
        %v1027 = vpop.permute.xlu0 %1026
        %1028 = vrot.lane.b32.xlu0 %v662, 80
        %v1029 = vpop.permute.xlu0 %1028
        %1030 = vrot.lane.b32.xlu0 %v665, 80
        %v1031 = vpop.permute.xlu0 %1030
        %1032 = vrot.lane.b32.xlu0 %v667, 80
        %v1033 = vpop.permute.xlu0 %1032
        %1034 = vrot.lane.b32.xlu0 %v670, 80
        %v1035 = vpop.permute.xlu0 %1034
        %1036 = vrot.lane.b32.xlu0 %v672, 80
        %v1037 = vpop.permute.xlu0 %1036
        %1038 = vrot.lane.b32.xlu0 %v675, 80
        %v1039 = vpop.permute.xlu0 %1038
        %1040 = vrot.lane.b32.xlu0 %v677, 80
        %v1041 = vpop.permute.xlu0 %1040
        %1042 = vrot.lane.b32.xlu0 %v680, 80
        %v1043 = vpop.permute.xlu0 %1042
        %1044 = vrot.lane.b32.xlu0 %v682, 80
        %v1045 = vpop.permute.xlu0 %1044
        %1046 = vrot.lane.b32.xlu0 %v685, 80
        %v1047 = vpop.permute.xlu0 %1046
        %1048 = vrot.lane.b32.xlu0 %v687, 80
        %v1049 = vpop.permute.xlu0 %1048
        %1050 = vrot.lane.b32.xlu0 %v690, 80
        %v1051 = vpop.permute.xlu0 %1050
        %1052 = vrot.lane.b32.xlu0 %v692, 80
        %v1053 = vpop.permute.xlu0 %1052
        %1054 = vrot.lane.b32.xlu0 %v695, 80
        %v1055 = vpop.permute.xlu0 %1054
        %1056 = vrot.lane.b32.xlu0 %v697, 80
        %v1057 = vpop.permute.xlu0 %1056
        %1058 = vrot.lane.b32.xlu0 %v700, 80
        %v1059 = vpop.permute.xlu0 %1058
        %1060 = vrot.lane.b32.xlu0 %v702, 80
        %v1061 = vpop.permute.xlu0 %1060
        %1062 = vrot.lane.b32.xlu0 %v705, 80
        %v1063 = vpop.permute.xlu0 %1062
        %1064 = vrot.lane.b32.xlu0 %v707, 80
        %v1065 = vpop.permute.xlu0 %1064
        %1066 = vrot.lane.b32.xlu0 %v710, 80
        %v1067 = vpop.permute.xlu0 %1066
        %1068 = vrot.lane.b32.xlu0 %v712, 80
        %v1069 = vpop.permute.xlu0 %1068
        %1070 = vrot.lane.b32.xlu0 %v1007, 80
        %v1071 = vpop.permute.xlu0 %1070
        %1072 = vrot.lane.b32.xlu0 %v1009, 80
        %v1073 = vpop.permute.xlu0 %1072
        %1106 = vrot.lane.b32.xlu0 %v402, 96
        %v1107 = vpop.permute.xlu0 %1106
        %1108 = vrot.lane.b32.xlu0 %v311, 96
        %v1109 = vpop.permute.xlu0 %1108
        %1110 = vrot.lane.b32.xlu0 %v403, 96
        %v1111 = vpop.permute.xlu0 %1110
        %1112 = vrot.lane.b32.xlu0 %v314, 96
        %v1113 = vpop.permute.xlu0 %1112
        %1114 = vrot.lane.b32.xlu0 %v404, 96
        %v1115 = vpop.permute.xlu0 %1114
        %1116 = vrot.lane.b32.xlu0 %v317, 96
        %v1117 = vpop.permute.xlu0 %1116
        %1118 = vrot.lane.b32.xlu0 %v405, 96
        %v1119 = vpop.permute.xlu0 %1118
        %1120 = vrot.lane.b32.xlu0 %v320, 96
        %v1121 = vpop.permute.xlu0 %1120
        %1122 = vrot.lane.b32.xlu0 %v406, 96
        %v1123 = vpop.permute.xlu0 %1122
        %1124 = vrot.lane.b32.xlu0 %v323, 96
        %v1125 = vpop.permute.xlu0 %1124
        %1126 = vrot.lane.b32.xlu0 %v407, 96
        %v1127 = vpop.permute.xlu0 %1126
        %1128 = vrot.lane.b32.xlu0 %v326, 96
        %v1129 = vpop.permute.xlu0 %1128
        %1130 = vrot.lane.b32.xlu0 %v408, 96
        %v1131 = vpop.permute.xlu0 %1130
        %1132 = vrot.lane.b32.xlu0 %v329, 96
        %v1133 = vpop.permute.xlu0 %1132
        %1134 = vrot.lane.b32.xlu0 %v409, 96
        %v1135 = vpop.permute.xlu0 %1134
        %1136 = vrot.lane.b32.xlu0 %v332, 96
        %v1137 = vpop.permute.xlu0 %1136
        %1138 = vrot.lane.b32.xlu0 %v410, 96
        %v1139 = vpop.permute.xlu0 %1138
        %1140 = vrot.lane.b32.xlu0 %v335, 96
        %v1141 = vpop.permute.xlu0 %1140
        %1142 = vrot.lane.b32.xlu0 %v411, 96
        %v1143 = vpop.permute.xlu0 %1142
        %1144 = vrot.lane.b32.xlu0 %v338, 96
        %v1145 = vpop.permute.xlu0 %1144
        %1146 = vrot.lane.b32.xlu0 %v412, 96
        %v1147 = vpop.permute.xlu0 %1146
        %1148 = vrot.lane.b32.xlu0 %v341, 96
        %v1149 = vpop.permute.xlu0 %1148
        %1150 = vrot.lane.b32.xlu0 %v413, 96
        %v1151 = vpop.permute.xlu0 %1150
        %1152 = vrot.lane.b32.xlu0 %v344, 96
        %v1153 = vpop.permute.xlu0 %1152
        %1154 = vrot.lane.b32.xlu0 %v414, 96
        %v1155 = vpop.permute.xlu0 %1154
        %1156 = vrot.lane.b32.xlu0 %v347, 96
        %v1157 = vpop.permute.xlu0 %1156
        %1158 = vrot.lane.b32.xlu0 %v415, 96
        %v1159 = vpop.permute.xlu0 %1158
        %1160 = vrot.lane.b32.xlu0 %v350, 96
        %v1161 = vpop.permute.xlu0 %1160
        %1162 = vrot.lane.b32.xlu0 %v416, 96
        %v1163 = vpop.permute.xlu0 %1162
        %1164 = vrot.lane.b32.xlu0 %v353, 96
        %v1165 = vpop.permute.xlu0 %1164
        %1166 = vrot.lane.b32.xlu0 0.0, 96
        %v1167 = vpop.permute.xlu0 %1166
        %1199 = vrot.lane.b32.xlu0 %v474, 112
        %v1200 = vpop.permute.xlu0 %1199
        %1201 = vrot.lane.b32.xlu0 %v476, 112
        %v1202 = vpop.permute.xlu0 %1201
        %1203 = vrot.lane.b32.xlu0 %v479, 112
        %v1204 = vpop.permute.xlu0 %1203
        %1205 = vrot.lane.b32.xlu0 %v481, 112
        %v1206 = vpop.permute.xlu0 %1205
        %1207 = vrot.lane.b32.xlu0 %v484, 112
        %v1208 = vpop.permute.xlu0 %1207
        %1209 = vrot.lane.b32.xlu0 %v486, 112
        %v1210 = vpop.permute.xlu0 %1209
        %1211 = vrot.lane.b32.xlu0 %v489, 112
        %v1212 = vpop.permute.xlu0 %1211
        %1213 = vrot.lane.b32.xlu0 %v491, 112
        %v1214 = vpop.permute.xlu0 %1213
        %1215 = vrot.lane.b32.xlu0 %v494, 112
        %v1216 = vpop.permute.xlu0 %1215
        %1217 = vrot.lane.b32.xlu0 %v496, 112
        %v1218 = vpop.permute.xlu0 %1217
        %1219 = vrot.lane.b32.xlu0 %v499, 112
        %v1220 = vpop.permute.xlu0 %1219
        %1221 = vrot.lane.b32.xlu0 %v501, 112
        %v1222 = vpop.permute.xlu0 %1221
        %1223 = vrot.lane.b32.xlu0 %v504, 112
        %v1224 = vpop.permute.xlu0 %1223
        %1225 = vrot.lane.b32.xlu0 %v506, 112
        %v1226 = vpop.permute.xlu0 %1225
        %1227 = vrot.lane.b32.xlu0 %v509, 112
        %v1228 = vpop.permute.xlu0 %1227
        %1229 = vrot.lane.b32.xlu0 %v511, 112
        %v1230 = vpop.permute.xlu0 %1229
        %1231 = vrot.lane.b32.xlu0 %v514, 112
        %v1232 = vpop.permute.xlu0 %1231
        %1233 = vrot.lane.b32.xlu0 %v516, 112
        %v1234 = vpop.permute.xlu0 %1233
        %1235 = vrot.lane.b32.xlu0 %v519, 112
        %v1236 = vpop.permute.xlu0 %1235
        %1237 = vrot.lane.b32.xlu0 %v521, 112
        %v1238 = vpop.permute.xlu0 %1237
        %1239 = vrot.lane.b32.xlu0 %v524, 112
        %v1240 = vpop.permute.xlu0 %1239
        %1241 = vrot.lane.b32.xlu0 %v526, 112
        %v1242 = vpop.permute.xlu0 %1241
        %1243 = vrot.lane.b32.xlu0 %v529, 112
        %v1244 = vpop.permute.xlu0 %1243
        %1245 = vrot.lane.b32.xlu0 %v531, 112
        %v1246 = vpop.permute.xlu0 %1245
        %1247 = vrot.lane.b32.xlu0 %v534, 112
        %v1248 = vpop.permute.xlu0 %1247
        %1249 = vrot.lane.b32.xlu0 %v536, 112
        %v1250 = vpop.permute.xlu0 %1249
        %1251 = vrot.lane.b32.xlu0 %v539, 112
        %v1252 = vpop.permute.xlu0 %1251
        %1253 = vrot.lane.b32.xlu0 %v541, 112
        %v1254 = vpop.permute.xlu0 %1253
        %1255 = vrot.lane.b32.xlu0 %v906, 112
        %v1256 = vpop.permute.xlu0 %1255
        %1257 = vrot.lane.b32.xlu0 %v908, 112
        %v1258 = vpop.permute.xlu0 %1257
        %1259 = vrot.lane.b32.xlu0 %v466, 112
        %v1260 = vpop.permute.xlu0 %1259
        %vm1323 = vcmask 130048
        %v1324 = vsel %vm1323, 0.0, %v543
        %v1325 = vsel %vm1323, %v401, %v545
        %v1326 = vsel %vm1323, %v308, %v547
        %v1327 = vsel %vm1323, %v402, %v549
        %v1328 = vsel %vm1323, %v311, %v551
        %v1329 = vsel %vm1323, %v403, %v553
        %v1330 = vsel %vm1323, %v314, %v555
        %v1331 = vsel %vm1323, %v404, %v557
        %v1332 = vsel %vm1323, %v317, %v559
        %v1333 = vsel %vm1323, %v405, %v561
        %v1334 = vsel %vm1323, %v320, %v563
        %v1335 = vsel %vm1323, %v406, %v565
        %v1336 = vsel %vm1323, %v323, %v567
        %v1337 = vsel %vm1323, %v407, %v569
        %v1338 = vsel %vm1323, %v326, %v571
        %v1339 = vsel %vm1323, %v408, %v573
        %v1340 = vsel %vm1323, %v329, %v575
        %v1341 = vsel %vm1323, %v409, %v577
        %v1342 = vsel %vm1323, %v332, %v579
        %v1343 = vsel %vm1323, %v410, %v581
        %v1344 = vsel %vm1323, %v335, %v583
        %v1345 = vsel %vm1323, %v411, %v585
        %v1346 = vsel %vm1323, %v338, %v587
        %v1347 = vsel %vm1323, %v412, %v589
        %v1348 = vsel %vm1323, %v341, %v591
        %v1349 = vsel %vm1323, %v413, %v593
        %v1350 = vsel %vm1323, %v344, %v595
        %v1351 = vsel %vm1323, %v414, %v597
        %v1352 = vsel %vm1323, %v347, %v599
        %v1353 = vsel %vm1323, %v415, %v601
        %v1354 = vsel %vm1323, %v350, %v603
        %vm1355 = vcmask 261120
        %v1356 = vsel %vm1355, %v1324, %v714
        %v1357 = vsel %vm1355, %v1325, %v716
        %v1358 = vsel %vm1355, %v1326, %v718
        %v1359 = vsel %vm1355, %v1327, %v720
        %v1360 = vsel %vm1355, %v1328, %v722
        %v1361 = vsel %vm1355, %v1329, %v724
        %v1362 = vsel %vm1355, %v1330, %v726
        %v1363 = vsel %vm1355, %v1331, %v728
        %v1364 = vsel %vm1355, %v1332, %v730
        %v1365 = vsel %vm1355, %v1333, %v732
        %v1366 = vsel %vm1355, %v1334, %v734
        %v1367 = vsel %vm1355, %v1335, %v736
        %v1368 = vsel %vm1355, %v1336, %v738
        %v1369 = vsel %vm1355, %v1337, %v740
        %v1370 = vsel %vm1355, %v1338, %v742
        %v1371 = vsel %vm1355, %v1339, %v744
        %v1372 = vsel %vm1355, %v1340, %v746
        %v1373 = vsel %vm1355, %v1341, %v748
        %v1374 = vsel %vm1355, %v1342, %v750
        %v1375 = vsel %vm1355, %v1343, %v752
        %v1376 = vsel %vm1355, %v1344, %v754
        %v1377 = vsel %vm1355, %v1345, %v756
        %v1378 = vsel %vm1355, %v1346, %v758
        %v1379 = vsel %vm1355, %v1347, %v760
        %v1380 = vsel %vm1355, %v1348, %v762
        %v1381 = vsel %vm1355, %v1349, %v764
        %v1382 = vsel %vm1355, %v1350, %v766
        %v1383 = vsel %vm1355, %v1351, %v768
        %v1384 = vsel %vm1355, %v1352, %v770
        %v1385 = vsel %vm1355, %v1353, %v772
        %v1386 = vsel %vm1355, %v1354, %v774
        %vm1387 = vcmask 392192
        %v1388 = vsel %vm1387, %v1356, %v808
        %v1389 = vsel %vm1387, %v1356, %v810
        %v1390 = vsel %vm1387, %v1357, %v812
        %v1391 = vsel %vm1387, %v1358, %v814
        %v1392 = vsel %vm1387, %v1359, %v816
        %v1393 = vsel %vm1387, %v1360, %v818
        %v1394 = vsel %vm1387, %v1361, %v820
        %v1395 = vsel %vm1387, %v1362, %v822
        %v1396 = vsel %vm1387, %v1363, %v824
        %v1397 = vsel %vm1387, %v1364, %v826
        %v1398 = vsel %vm1387, %v1365, %v828
        %v1399 = vsel %vm1387, %v1366, %v830
        %v1400 = vsel %vm1387, %v1367, %v832
        %v1401 = vsel %vm1387, %v1368, %v834
        %v1402 = vsel %vm1387, %v1369, %v836
        %v1403 = vsel %vm1387, %v1370, %v838
        %v1404 = vsel %vm1387, %v1371, %v840
        %v1405 = vsel %vm1387, %v1372, %v842
        %v1406 = vsel %vm1387, %v1373, %v844
        %v1407 = vsel %vm1387, %v1374, %v846
        %v1408 = vsel %vm1387, %v1375, %v848
        %v1409 = vsel %vm1387, %v1376, %v850
        %v1410 = vsel %vm1387, %v1377, %v852
        %v1411 = vsel %vm1387, %v1378, %v854
        %v1412 = vsel %vm1387, %v1379, %v856
        %v1413 = vsel %vm1387, %v1380, %v858
        %v1414 = vsel %vm1387, %v1381, %v860
        %v1415 = vsel %vm1387, %v1382, %v862
        %v1416 = vsel %vm1387, %v1383, %v864
        %v1417 = vsel %vm1387, %v1384, %v866
        %v1418 = vsel %vm1387, %v1385, %v868
        %v1419 = vsel %vm1387, %v1386, %v870
        %vm1420 = vcmask 523264
        %v1421 = vsel %vm1420, %v1388, %v910
        %v1422 = vsel %vm1420, %v1389, %v912
        %v1423 = vsel %vm1420, %v1390, %v914
        %v1424 = vsel %vm1420, %v1391, %v916
        %v1425 = vsel %vm1420, %v1392, %v918
        %v1426 = vsel %vm1420, %v1393, %v920
        %v1427 = vsel %vm1420, %v1394, %v922
        %v1428 = vsel %vm1420, %v1395, %v924
        %v1429 = vsel %vm1420, %v1396, %v926
        %v1430 = vsel %vm1420, %v1397, %v928
        %v1431 = vsel %vm1420, %v1398, %v930
        %v1432 = vsel %vm1420, %v1399, %v932
        %v1433 = vsel %vm1420, %v1400, %v934
        %v1434 = vsel %vm1420, %v1401, %v936
        %v1435 = vsel %vm1420, %v1402, %v938
        %v1436 = vsel %vm1420, %v1403, %v940
        %v1437 = vsel %vm1420, %v1404, %v942
        %v1438 = vsel %vm1420, %v1405, %v944
        %v1439 = vsel %vm1420, %v1406, %v946
        %v1440 = vsel %vm1420, %v1407, %v948
        %v1441 = vsel %vm1420, %v1408, %v950
        %v1442 = vsel %vm1420, %v1409, %v952
        %v1443 = vsel %vm1420, %v1410, %v954
        %v1444 = vsel %vm1420, %v1411, %v956
        %v1445 = vsel %vm1420, %v1412, %v958
        %v1446 = vsel %vm1420, %v1413, %v960
        %v1447 = vsel %vm1420, %v1414, %v962
        %v1448 = vsel %vm1420, %v1415, %v964
        %v1449 = vsel %vm1420, %v1416, %v966
        %v1450 = vsel %vm1420, %v1417, %v968
        %v1451 = vsel %vm1420, %v1418, %v970
        %v1452 = vsel %vm1420, %v1419, %v972
        %vm1453 = vcmask 654336
        %v1454 = vsel %vm1453, %v1421, %v1011
        %v1455 = vsel %vm1453, %v1422, %v1013
        %v1456 = vsel %vm1453, %v1423, %v1015
        %v1457 = vsel %vm1453, %v1424, %v1017
        %v1458 = vsel %vm1453, %v1425, %v1019
        %v1459 = vsel %vm1453, %v1426, %v1021
        %v1460 = vsel %vm1453, %v1427, %v1023
        %v1461 = vsel %vm1453, %v1428, %v1025
        %v1462 = vsel %vm1453, %v1429, %v1027
        %v1463 = vsel %vm1453, %v1430, %v1029
        %v1464 = vsel %vm1453, %v1431, %v1031
        %v1465 = vsel %vm1453, %v1432, %v1033
        %v1466 = vsel %vm1453, %v1433, %v1035
        %v1467 = vsel %vm1453, %v1434, %v1037
        %v1468 = vsel %vm1453, %v1435, %v1039
        %v1469 = vsel %vm1453, %v1436, %v1041
        %v1470 = vsel %vm1453, %v1437, %v1043
        %v1471 = vsel %vm1453, %v1438, %v1045
        %v1472 = vsel %vm1453, %v1439, %v1047
        %v1473 = vsel %vm1453, %v1440, %v1049
        %v1474 = vsel %vm1453, %v1441, %v1051
        %v1475 = vsel %vm1453, %v1442, %v1053
        %v1476 = vsel %vm1453, %v1443, %v1055
        %v1477 = vsel %vm1453, %v1444, %v1057
        %v1478 = vsel %vm1453, %v1445, %v1059
        %v1479 = vsel %vm1453, %v1446, %v1061
        %v1480 = vsel %vm1453, %v1447, %v1063
        %v1481 = vsel %vm1453, %v1448, %v1065
        %v1482 = vsel %vm1453, %v1449, %v1067
        %v1483 = vsel %vm1453, %v1450, %v1069
        %v1484 = vsel %vm1453, %v1451, %v1071
        %v1485 = vsel %vm1453, %v1452, %v1073
        %vm1486 = vcmask 785408
        %v1487 = vsel %vm1486, %v1454, %v1107
        %v1488 = vsel %vm1486, %v1455, %v1109
        %v1489 = vsel %vm1486, %v1456, %v1111
        %v1490 = vsel %vm1486, %v1457, %v1113
        %v1491 = vsel %vm1486, %v1458, %v1115
        %v1492 = vsel %vm1486, %v1459, %v1117
        %v1493 = vsel %vm1486, %v1460, %v1119
        %v1494 = vsel %vm1486, %v1461, %v1121
        %v1495 = vsel %vm1486, %v1462, %v1123
        %v1496 = vsel %vm1486, %v1463, %v1125
        %v1497 = vsel %vm1486, %v1464, %v1127
        %v1498 = vsel %vm1486, %v1465, %v1129
        %v1499 = vsel %vm1486, %v1466, %v1131
        %v1500 = vsel %vm1486, %v1467, %v1133
        %v1501 = vsel %vm1486, %v1468, %v1135
        %v1502 = vsel %vm1486, %v1469, %v1137
        %v1503 = vsel %vm1486, %v1470, %v1139
        %v1504 = vsel %vm1486, %v1471, %v1141
        %v1505 = vsel %vm1486, %v1472, %v1143
        %v1506 = vsel %vm1486, %v1473, %v1145
        %v1507 = vsel %vm1486, %v1474, %v1147
        %v1508 = vsel %vm1486, %v1475, %v1149
        %v1509 = vsel %vm1486, %v1476, %v1151
        %v1510 = vsel %vm1486, %v1477, %v1153
        %v1511 = vsel %vm1486, %v1478, %v1155
        %v1512 = vsel %vm1486, %v1479, %v1157
        %v1513 = vsel %vm1486, %v1480, %v1159
        %v1514 = vsel %vm1486, %v1481, %v1161
        %v1515 = vsel %vm1486, %v1482, %v1163
        %v1516 = vsel %vm1486, %v1483, %v1165
        %v1517 = vsel %vm1486, %v1484, %v1167
        %v1518 = vsel %vm1486, %v1485, %v1167
        %vm1519 = vcmask 916480
        %v1520 = vsel %vm1519, %v1487, %v1200
        %v1521 = vsel %vm1519, %v1488, %v1202
        %v1522 = vsel %vm1519, %v1489, %v1204
        %v1523 = vsel %vm1519, %v1490, %v1206
        %v1524 = vsel %vm1519, %v1491, %v1208
        %v1525 = vsel %vm1519, %v1492, %v1210
        %v1526 = vsel %vm1519, %v1493, %v1212
        %v1527 = vsel %vm1519, %v1494, %v1214
        %v1528 = vsel %vm1519, %v1495, %v1216
        %v1529 = vsel %vm1519, %v1496, %v1218
        %v1530 = vsel %vm1519, %v1497, %v1220
        %v1531 = vsel %vm1519, %v1498, %v1222
        %v1532 = vsel %vm1519, %v1499, %v1224
        %v1533 = vsel %vm1519, %v1500, %v1226
        %v1534 = vsel %vm1519, %v1501, %v1228
        %v1535 = vsel %vm1519, %v1502, %v1230
        %v1536 = vsel %vm1519, %v1503, %v1232
        %v1537 = vsel %vm1519, %v1504, %v1234
        %v1538 = vsel %vm1519, %v1505, %v1236
        %v1539 = vsel %vm1519, %v1506, %v1238
        %v1540 = vsel %vm1519, %v1507, %v1240
        %v1541 = vsel %vm1519, %v1508, %v1242
        %v1542 = vsel %vm1519, %v1509, %v1244
        %v1543 = vsel %vm1519, %v1510, %v1246
        %v1544 = vsel %vm1519, %v1511, %v1248
        %v1545 = vsel %vm1519, %v1512, %v1250
        %v1546 = vsel %vm1519, %v1513, %v1252
        %v1547 = vsel %vm1519, %v1514, %v1254
        %v1548 = vsel %vm1519, %v1515, %v1256
        %v1549 = vsel %vm1519, %v1516, %v1258
        %v1550 = vsel %vm1519, %v1517, %v1260
        %v1551 = vsel %vm1519, %v1518, %v1260
        %v1552 = vpack.c.bf16 %v1521, %v1520
        %v1553 = vpack.c.bf16 %v647, %v645
        %v1554 = vpack.c.bf16 %v1523, %v1522
        %v1555 = vpack.c.bf16 %v652, %v650
        %v1556 = vpack.c.bf16 %v1525, %v1524
        %v1557 = vpack.c.bf16 %v657, %v655
        %v1558 = vpack.c.bf16 %v1527, %v1526
        %v1559 = vpack.c.bf16 %v662, %v660
        %v1560 = vpack.c.bf16 %v1529, %v1528
        %v1561 = vpack.c.bf16 %v667, %v665
        %v1562 = vpack.c.bf16 %v1531, %v1530
        %v1563 = vpack.c.bf16 %v672, %v670
        %v1564 = vpack.c.bf16 %v1533, %v1532
        %v1565 = vpack.c.bf16 %v677, %v675
        %v1566 = vpack.c.bf16 %v1535, %v1534
        %v1567 = vpack.c.bf16 %v682, %v680
        %v1568 = vpack.c.bf16 %v1537, %v1536
        %v1569 = vpack.c.bf16 %v687, %v685
        %v1570 = vpack.c.bf16 %v1539, %v1538
        %v1571 = vpack.c.bf16 %v692, %v690
        %v1572 = vpack.c.bf16 %v1541, %v1540
        %v1573 = vpack.c.bf16 %v697, %v695
        %v1574 = vpack.c.bf16 %v1543, %v1542
        %v1575 = vpack.c.bf16 %v702, %v700
        %v1576 = vpack.c.bf16 %v1545, %v1544
        %v1577 = vpack.c.bf16 %v707, %v705
        %v1578 = vpack.c.bf16 %v1547, %v1546
        %v1579 = vpack.c.bf16 %v712, %v710
        %v1580 = vpack.c.bf16 %v1549, %v1548
        %v1581 = vpack.c.bf16 %v1009, %v1007
        %v1582 = vpack.c.bf16 %v1551, %v1550
        %v1583 = vpack.c.bf16 %v637, %v637
        %v1585 = vlaneseq
        %v1586 = vshrl.u32 %v1585, 7
        %v1587 = vsub.s32 0, %v1586
        %v1588 = vrot.slane %v272, %v1587
        %v1608 = vunpack.c.l.b16 %v254
        %v1609 = vunpack.c.l.b16 %v255
        %v1610 = vunpack.c.l.b16 %v256
        %v1611 = vunpack.c.l.b16 %v257
        %v1612 = vunpack.c.l.b16 %v258
        %v1613 = vunpack.c.l.b16 %v259
        %v1614 = vunpack.c.l.b16 %v260
        %v1615 = vunpack.c.l.b16 %v261
        %v1616 = vunpack.c.l.b16 %v262
        %v1617 = vunpack.c.l.b16 %v263
        %v1618 = vunpack.c.l.b16 %v264
        %v1619 = vunpack.c.l.b16 %v265
        %v1620 = vunpack.c.l.b16 %v266
        %v1621 = vunpack.c.l.b16 %v267
        %v1622 = vunpack.c.l.b16 %v268
        %v1623 = vunpack.c.l.b16 %v269
        %v1624 = vunpack.c.l.b16 %v270
        %v1625 = vunpack.c.l.b16 %v271
        %v1626 = vpack.c.b16 %v1609, %v1608
        %v1627 = vpack.c.b16 %v1611, %v1610
        %v1628 = vpack.c.b16 %v1613, %v1612
        %v1629 = vpack.c.b16 %v1615, %v1614
        %v1630 = vpack.c.b16 %v1617, %v1616
        %v1631 = vpack.c.b16 %v1619, %v1618
        %v1632 = vpack.c.b16 %v1621, %v1620
        %v1633 = vpack.c.b16 %v1623, %v1622
        %v1634 = vpack.c.b16 %v1625, %v1624
        %v1645 = vsel %vm1323, %v1553, 0
        %v1648 = vsel %vm1323, %v1555, 0
        %v1651 = vsel %vm1323, %v1557, 0
        %v1654 = vsel %vm1323, %v1559, 0
        %v1657 = vsel %vm1323, %v1561, 0
        %v1660 = vsel %vm1323, %v1563, 0
        %v1663 = vsel %vm1323, %v1565, 0
        %v1666 = vsel %vm1323, %v1567, 0
        %v1669 = vsel %vm1323, %v1569, 0
        %v1672 = vsel %vm1323, %v1571, 0
        %v1675 = vsel %vm1323, %v1573, 0
        %v1678 = vsel %vm1323, %v1575, 0
        %v1681 = vsel %vm1323, %v1577, 0
        %v1684 = vsel %vm1323, %v1579, 0
        %v1687 = vsel %vm1323, %v1581, 0
        %v1690 = vsel %vm1323, %v1583, 0
        %1692 = vmatprep.subr.bf16.mxu0 0
        %1693 = vmatpush1.bf16.msra.mxu0 %v1626
        %1694 = vmatprep.subr.bf16.mxu0 0
        %1695 = vmatpush1.bf16.msra.mxu0 %v1627
        %1696 = vmatprep.subr.bf16.mxu0 0
        %1697 = vmatpush1.bf16.msra.mxu0 %v1628
        %1698 = vmatprep.subr.bf16.mxu0 0
        %1699 = vmatpush1.bf16.msra.mxu0 %v1629
        %1700 = vmatprep.subr.bf16.mxu0 0
        %1701 = vmatpush1.bf16.msra.mxu0 %v1630
        %1702 = vmatprep.subr.bf16.mxu0 0
        %1703 = vmatpush1.bf16.msra.mxu0 %v1631
        %1704 = vmatprep.subr.bf16.mxu0 0
        %1705 = vmatpush1.bf16.msra.mxu0 %v1632
        %1706 = vmatprep.subr.bf16.mxu0 0
        %1707 = vmatpush1.bf16.msra.mxu0 %v1633
        %1708 = vmatprep.subr.bf16.mxu0 0
        %1709 = vmatpush1.bf16.msra.mxu0 %v1634
        %1710 = vmatprep.subr.bf16.mxu0 0
        %1711 = vmatpush1.bf16.msra.mxu0 0
        %1712 = vmatprep.subr.bf16.mxu0 0
        %1713 = vmatpush1.bf16.msra.mxu0 0
        %1714 = vmatprep.subr.bf16.mxu0 0
        %1715 = vmatpush1.bf16.msra.mxu0 0
        %1716 = vmatprep.subr.bf16.mxu0 0
        %1717 = vmatpush1.bf16.msra.mxu0 0
        %1718 = vmatprep.subr.bf16.mxu0 0
        %1719 = vmatpush1.bf16.msra.mxu0 0
        %1720 = vmatprep.subr.bf16.mxu0 0
        %1721 = vmatpush1.bf16.msra.mxu0 0
        %1722 = vmatprep.subr.bf16.mxu0 0
        %1723 = vmatpush1.bf16.msra.mxu0 0
        %1724 = vmatprep.mubr.bf16.mxu0 %v1645
        %1725 = vmatmul.mubr.bf16.gmra.mrb[0].mxu0 %v1552
        %v1726 = vpop.f32.mrb[0].mxu0
        %v1727 = vadd.f32 %v1588, %v1726
        %v1728 = vpop.f32.mrb[0].mxu0
        %v1729 = vpop.f32.mrb[0].mxu0
        %v1730 = vadd.f32 %v1588, %v1729
        %v1731 = vpop.f32.mrb[0].mxu0
        %1732 = vmatprep.mubr.bf16.mxu0 %v1648
        %1733 = vmatmul.mubr.bf16.gmra.mrb[0].mxu0 %v1554
        %v1734 = vpop.f32.mrb[0].mxu0
        %v1735 = vadd.f32 %v1588, %v1734
        %v1736 = vpop.f32.mrb[0].mxu0
        %v1737 = vpop.f32.mrb[0].mxu0
        %v1738 = vadd.f32 %v1588, %v1737
        %v1739 = vpop.f32.mrb[0].mxu0
        %1740 = vmatprep.mubr.bf16.mxu0 %v1651
        %1741 = vmatmul.mubr.bf16.gmra.mrb[0].mxu0 %v1556
        %v1742 = vpop.f32.mrb[0].mxu0
        %v1743 = vadd.f32 %v1588, %v1742
        %v1744 = vpop.f32.mrb[0].mxu0
        %v1745 = vpop.f32.mrb[0].mxu0
        %v1746 = vadd.f32 %v1588, %v1745
        %v1747 = vpop.f32.mrb[0].mxu0
        %1748 = vmatprep.mubr.bf16.mxu0 %v1654
        %1749 = vmatmul.mubr.bf16.gmra.mrb[0].mxu0 %v1558
        %v1750 = vpop.f32.mrb[0].mxu0
        %v1751 = vadd.f32 %v1588, %v1750
        %v1752 = vpop.f32.mrb[0].mxu0
        %v1753 = vpop.f32.mrb[0].mxu0
        %v1754 = vadd.f32 %v1588, %v1753
        %v1755 = vpop.f32.mrb[0].mxu0
        %1756 = vmatprep.mubr.bf16.mxu0 %v1657
        %1757 = vmatmul.mubr.bf16.gmra.mrb[0].mxu0 %v1560
        %v1758 = vpop.f32.mrb[0].mxu0
        %v1759 = vadd.f32 %v1588, %v1758
        %v1760 = vpop.f32.mrb[0].mxu0
        %v1761 = vpop.f32.mrb[0].mxu0
        %v1762 = vadd.f32 %v1588, %v1761
        %v1763 = vpop.f32.mrb[0].mxu0
        %1764 = vmatprep.mubr.bf16.mxu0 %v1660
        %1765 = vmatmul.mubr.bf16.gmra.mrb[0].mxu0 %v1562
        %v1766 = vpop.f32.mrb[0].mxu0
        %v1767 = vadd.f32 %v1588, %v1766
        %v1768 = vpop.f32.mrb[0].mxu0
        %v1769 = vpop.f32.mrb[0].mxu0
        %v1770 = vadd.f32 %v1588, %v1769
        %v1771 = vpop.f32.mrb[0].mxu0
        %1772 = vmatprep.mubr.bf16.mxu0 %v1663
        %1773 = vmatmul.mubr.bf16.gmra.mrb[0].mxu0 %v1564
        %v1774 = vpop.f32.mrb[0].mxu0
        %v1775 = vadd.f32 %v1588, %v1774
        %v1776 = vpop.f32.mrb[0].mxu0
        %v1777 = vpop.f32.mrb[0].mxu0
        %v1778 = vadd.f32 %v1588, %v1777
        %v1779 = vpop.f32.mrb[0].mxu0
        %1780 = vmatprep.mubr.bf16.mxu0 %v1666
        %1781 = vmatmul.mubr.bf16.gmra.mrb[0].mxu0 %v1566
        %v1782 = vpop.f32.mrb[0].mxu0
        %v1783 = vadd.f32 %v1588, %v1782
        %v1784 = vpop.f32.mrb[0].mxu0
        %v1785 = vpop.f32.mrb[0].mxu0
        %v1786 = vadd.f32 %v1588, %v1785
        %v1787 = vpop.f32.mrb[0].mxu0
        %1788 = vmatprep.mubr.bf16.mxu0 %v1669
        %1789 = vmatmul.mubr.bf16.gmra.mrb[0].mxu0 %v1568
        %v1790 = vpop.f32.mrb[0].mxu0
        %v1791 = vadd.f32 %v1588, %v1790
        %v1792 = vpop.f32.mrb[0].mxu0
        %v1793 = vpop.f32.mrb[0].mxu0
        %v1794 = vadd.f32 %v1588, %v1793
        %v1795 = vpop.f32.mrb[0].mxu0
        %1796 = vmatprep.mubr.bf16.mxu0 %v1672
        %1797 = vmatmul.mubr.bf16.gmra.mrb[0].mxu0 %v1570
        %v1798 = vpop.f32.mrb[0].mxu0
        %v1799 = vadd.f32 %v1588, %v1798
        %v1800 = vpop.f32.mrb[0].mxu0
        %v1801 = vpop.f32.mrb[0].mxu0
        %v1802 = vadd.f32 %v1588, %v1801
        %v1803 = vpop.f32.mrb[0].mxu0
        %1804 = vmatprep.mubr.bf16.mxu0 %v1675
        %1805 = vmatmul.mubr.bf16.gmra.mrb[0].mxu0 %v1572
        %v1806 = vpop.f32.mrb[0].mxu0
        %v1807 = vadd.f32 %v1588, %v1806
        %v1808 = vpop.f32.mrb[0].mxu0
        %v1809 = vpop.f32.mrb[0].mxu0
        %v1810 = vadd.f32 %v1588, %v1809
        %v1811 = vpop.f32.mrb[0].mxu0
        %1812 = vmatprep.mubr.bf16.mxu0 %v1678
        %1813 = vmatmul.mubr.bf16.gmra.mrb[0].mxu0 %v1574
        %v1814 = vpop.f32.mrb[0].mxu0
        %v1815 = vadd.f32 %v1588, %v1814
        %v1816 = vpop.f32.mrb[0].mxu0
        %v1817 = vpop.f32.mrb[0].mxu0
        %v1818 = vadd.f32 %v1588, %v1817
        %v1819 = vpop.f32.mrb[0].mxu0
        %1820 = vmatprep.mubr.bf16.mxu0 %v1681
        %1821 = vmatmul.mubr.bf16.gmra.mrb[0].mxu0 %v1576
        %v1822 = vpop.f32.mrb[0].mxu0
        %v1823 = vadd.f32 %v1588, %v1822
        %v1824 = vpop.f32.mrb[0].mxu0
        %v1825 = vpop.f32.mrb[0].mxu0
        %v1826 = vadd.f32 %v1588, %v1825
        %v1827 = vpop.f32.mrb[0].mxu0
        %1828 = vmatprep.mubr.bf16.mxu0 %v1684
        %1829 = vmatmul.mubr.bf16.gmra.mrb[0].mxu0 %v1578
        %v1830 = vpop.f32.mrb[0].mxu0
        %v1831 = vadd.f32 %v1588, %v1830
        %v1832 = vpop.f32.mrb[0].mxu0
        %v1833 = vpop.f32.mrb[0].mxu0
        %v1834 = vadd.f32 %v1588, %v1833
        %v1835 = vpop.f32.mrb[0].mxu0
        %1836 = vmatprep.mubr.bf16.mxu0 %v1687
        %1837 = vmatmul.mubr.bf16.gmra.mrb[0].mxu0 %v1580
        %v1838 = vpop.f32.mrb[0].mxu0
        %v1839 = vadd.f32 %v1588, %v1838
        %v1840 = vpop.f32.mrb[0].mxu0
        %v1841 = vpop.f32.mrb[0].mxu0
        %v1842 = vadd.f32 %v1588, %v1841
        %v1843 = vpop.f32.mrb[0].mxu0
        %1844 = vmatprep.mubr.bf16.mxu0 %v1690
        %1845 = vmatmul.mubr.bf16.gmra.mrb[0].mxu0 %v1582
        %v1846 = vpop.f32.mrb[0].mxu0
        %v1847 = vadd.f32 %v1588, %v1846
        %v1848 = vpop.f32.mrb[0].mxu0
        %v1849 = vpop.f32.mrb[0].mxu0
        %v1850 = vadd.f32 %v1588, %v1849
        %v1851 = vpop.f32.mrb[0].mxu0
        %1852 = vdwg.mxu0
        %v1853 = vtanh.pop %v1727
        %v1854 = vtanh.pop %v1730
        %v1855 = vtanh.pop %v1735
        %v1856 = vtanh.pop %v1738
        %v1857 = vtanh.pop %v1743
        %v1858 = vtanh.pop %v1746
        %v1859 = vtanh.pop %v1751
        %v1860 = vtanh.pop %v1754
        %v1861 = vtanh.pop %v1759
        %v1862 = vtanh.pop %v1762
        %v1863 = vtanh.pop %v1767
        %v1864 = vtanh.pop %v1770
        %v1865 = vtanh.pop %v1775
        %v1866 = vtanh.pop %v1778
        %v1867 = vtanh.pop %v1783
        %v1868 = vtanh.pop %v1786
        %v1869 = vtanh.pop %v1791
        %v1870 = vtanh.pop %v1794
        %v1871 = vtanh.pop %v1799
        %v1872 = vtanh.pop %v1802
        %v1873 = vtanh.pop %v1807
        %v1874 = vtanh.pop %v1810
        %v1875 = vtanh.pop %v1815
        %v1876 = vtanh.pop %v1818
        %v1877 = vtanh.pop %v1823
        %v1878 = vtanh.pop %v1826
        %v1879 = vtanh.pop %v1831
        %v1880 = vtanh.pop %v1834
        %v1881 = vtanh.pop %v1839
        %v1882 = vtanh.pop %v1842
        %v1883 = vtanh.pop %v1847
        %v1884 = vtanh.pop %v1850
        %v1885 = vpack.c.bf16 %v1854, %v1853
        %v1886 = vpack.c.bf16 %v1856, %v1855
        %v1887 = vpack.c.bf16 %v1858, %v1857
        %v1888 = vpack.c.bf16 %v1860, %v1859
        %v1889 = vpack.c.bf16 %v1862, %v1861
        %v1890 = vpack.c.bf16 %v1864, %v1863
        %v1891 = vpack.c.bf16 %v1866, %v1865
        %v1892 = vpack.c.bf16 %v1868, %v1867
        %v1893 = vpack.c.bf16 %v1870, %v1869
        %v1894 = vpack.c.bf16 %v1872, %v1871
        %v1895 = vpack.c.bf16 %v1874, %v1873
        %v1896 = vpack.c.bf16 %v1876, %v1875
        %v1897 = vpack.c.bf16 %v1878, %v1877
        %v1898 = vpack.c.bf16 %v1880, %v1879
        %v1899 = vpack.c.bf16 %v1882, %v1881
        %v1900 = vpack.c.bf16 %v1884, %v1883
        %v1917 = vunpack.c.l.b16 %v1885
        %v1918 = vunpack.c.h.b16 %v1885
        %v1919 = vunpack.c.l.b16 %v1886
        %v1920 = vunpack.c.h.b16 %v1886
        %v1921 = vunpack.c.l.b16 %v1887
        %v1922 = vunpack.c.h.b16 %v1887
        %v1923 = vunpack.c.l.b16 %v1888
        %v1924 = vunpack.c.h.b16 %v1888
        %v1925 = vunpack.c.l.b16 %v1889
        %v1926 = vunpack.c.h.b16 %v1889
        %v1927 = vunpack.c.l.b16 %v1890
        %v1928 = vunpack.c.h.b16 %v1890
        %v1929 = vunpack.c.l.b16 %v1891
        %v1930 = vunpack.c.h.b16 %v1891
        %v1931 = vunpack.c.l.b16 %v1892
        %v1932 = vunpack.c.h.b16 %v1892
        %v1933 = vunpack.c.l.b16 %v1893
        %v1934 = vunpack.c.h.b16 %v1893
        %v1935 = vunpack.c.l.b16 %v1894
        %v1936 = vunpack.c.h.b16 %v1894
        %v1937 = vunpack.c.l.b16 %v1895
        %v1938 = vunpack.c.h.b16 %v1895
        %v1939 = vunpack.c.l.b16 %v1896
        %v1940 = vunpack.c.h.b16 %v1896
        %v1941 = vunpack.c.l.b16 %v1897
        %v1942 = vunpack.c.h.b16 %v1897
        %v1943 = vunpack.c.l.b16 %v1898
        %v1944 = vunpack.c.h.b16 %v1898
        %v1945 = vunpack.c.l.b16 %v1899
        %v1946 = vunpack.c.h.b16 %v1899
        %v1947 = vunpack.c.l.b16 %v1900
        %v1948 = vunpack.c.h.b16 %v1900
        %v1949 = vpack.c.b16 %v1917, %v1917
        %v1950 = vpack.c.b16 %v1918, %v1918
        %v1951 = vpack.c.b16 %v1919, %v1919
        %v1952 = vpack.c.b16 %v1920, %v1920
        %v1953 = vpack.c.b16 %v1921, %v1921
        %v1954 = vpack.c.b16 %v1922, %v1922
        %v1955 = vpack.c.b16 %v1923, %v1923
        %v1956 = vpack.c.b16 %v1924, %v1924
        %v1957 = vpack.c.b16 %v1925, %v1925
        %v1958 = vpack.c.b16 %v1926, %v1926
        %v1959 = vpack.c.b16 %v1927, %v1927
        %v1960 = vpack.c.b16 %v1928, %v1928
        %v1961 = vpack.c.b16 %v1929, %v1929
        %v1962 = vpack.c.b16 %v1930, %v1930
        %v1963 = vpack.c.b16 %v1931, %v1931
        %v1964 = vpack.c.b16 %v1932, %v1932
        %v1965 = vpack.c.b16 %v1933, %v1933
        %v1966 = vpack.c.b16 %v1934, %v1934
        %v1967 = vpack.c.b16 %v1935, %v1935
        %v1968 = vpack.c.b16 %v1936, %v1936
        %v1969 = vpack.c.b16 %v1937, %v1937
        %v1970 = vpack.c.b16 %v1938, %v1938
        %v1971 = vpack.c.b16 %v1939, %v1939
        %v1972 = vpack.c.b16 %v1940, %v1940
        %v1973 = vpack.c.b16 %v1941, %v1941
        %v1974 = vpack.c.b16 %v1942, %v1942
        %v1975 = vpack.c.b16 %v1943, %v1943
        %v1976 = vpack.c.b16 %v1944, %v1944
        %v1977 = vpack.c.b16 %v1945, %v1945
        %v1978 = vpack.c.b16 %v1946, %v1946
        %v1979 = vpack.c.b16 %v1947, %v1947
        %v1980 = vpack.c.b16 %v1948, %v1948
        %vm2013 = vcmask 257024
        %2014 = vst.msk [vmem:[%s188] sm:$0xf] %vm2013, %v1949
        %2015 = vst.msk [vmem:[%s188 + $0x4] sm:$0xf] %vm2013, %v1950
        %2016 = vst.msk [vmem:[%s188 + $0x8] sm:$0xf] %vm2013, %v1951
        %2017 = vst.msk [vmem:[%s188 + $0xc] sm:$0xf] %vm2013, %v1952
        %2018 = vst.msk [vmem:[%s188 + $0x10] sm:$0xf] %vm2013, %v1953
        %2019 = vst.msk [vmem:[%s188 + $0x14] sm:$0xf] %vm2013, %v1954
        %2020 = vst.msk [vmem:[%s188 + $0x18] sm:$0xf] %vm2013, %v1955
        %2021 = vst.msk [vmem:[%s188 + $0x1c] sm:$0xf] %vm2013, %v1956
        %2022 = vst.msk [vmem:[%s188 + $0x20] sm:$0xf] %vm2013, %v1957
        %2023 = vst.msk [vmem:[%s188 + $0x24] sm:$0xf] %vm2013, %v1958
        %2024 = vst.msk [vmem:[%s188 + $0x28] sm:$0xf] %vm2013, %v1959
        %2025 = vst.msk [vmem:[%s188 + $0x2c] sm:$0xf] %vm2013, %v1960
        %2026 = vst.msk [vmem:[%s188 + $0x30] sm:$0xf] %vm2013, %v1961
        %2027 = vst.msk [vmem:[%s188 + $0x34] sm:$0xf] %vm2013, %v1962
        %2028 = vst.msk [vmem:[%s188 + $0x38] sm:$0xf] %vm2013, %v1963
        %2029 = vst.msk [vmem:[%s188 + $0x3c] sm:$0xf] %vm2013, %v1964
        %2030 = vst.msk [vmem:[%s188 + $0x40] sm:$0xf] %vm2013, %v1965
        %2031 = vst.msk [vmem:[%s188 + $0x44] sm:$0xf] %vm2013, %v1966
        %2032 = vst.msk [vmem:[%s188 + $0x48] sm:$0xf] %vm2013, %v1967
        %2033 = vst.msk [vmem:[%s188 + $0x4c] sm:$0xf] %vm2013, %v1968
        %2034 = vst.msk [vmem:[%s188 + $0x50] sm:$0xf] %vm2013, %v1969
        %2035 = vst.msk [vmem:[%s188 + $0x54] sm:$0xf] %vm2013, %v1970
        %2036 = vst.msk [vmem:[%s188 + $0x58] sm:$0xf] %vm2013, %v1971
        %2037 = vst.msk [vmem:[%s188 + $0x5c] sm:$0xf] %vm2013, %v1972
        %2038 = vst.msk [vmem:[%s188 + $0x60] sm:$0xf] %vm2013, %v1973
        %2039 = vst.msk [vmem:[%s188 + $0x64] sm:$0xf] %vm2013, %v1974
        %2040 = vst.msk [vmem:[%s188 + $0x68] sm:$0xf] %vm2013, %v1975
        %2041 = vst.msk [vmem:[%s188 + $0x6c] sm:$0xf] %vm2013, %v1976
        %2042 = vst.msk [vmem:[%s188 + $0x70] sm:$0xf] %vm2013, %v1977
        %2043 = vst.msk [vmem:[%s188 + $0x74] sm:$0xf] %vm2013, %v1978
        %2044 = vst.msk [vmem:[%s188 + $0x78] sm:$0xf] %vm2013, %v1979
        %2045 = vst.msk [vmem:[%s188 + $0x7c] sm:$0xf] %vm2013, %v1980
        %s2046 = sand.u32 %s96, 1
        %s2047 = scalar_lea.sflag [#allocation4], %s2046
        %s2048 = sand.u32 %s96, 1
        %s2049 = smul.addr %s2048, 128
        %s2050 = scalar_lea.vmem [#allocation5], %s2049
        // Predicated region
        $region37: #{tpu_custom_call.1} parent=31 // pred_check
          %p2051 = pneg %p106
        $region38: #{tpu_custom_call.1} parent=31 // pred_check_branch
          %2053 = sbr.rel (%p2051) target = $region40
        $region39: #{tpu_custom_call.1} parent=31 // pred_region
          %s2055 = ssub.s32 2048, 2048
          %2056 = vsyncadd %s2047, %s2055
          %s2057 = smul.addr %s20, 32
          %s2058 = smul.addr %s2057, 64
          %s2059 = scalar_lea.hbm %s3, %s2058
          %s2060 = sshll.u32 %s2050, 4
          %s2061 = int_to_ptr.vmem [resolvable:$true] %s2060
          %2066 = dma.vmem_to_hbm [thread:$0]  %s2061, 2048, %s2059, %s2047, 64, 64, 4
        $region40: #{tpu_custom_call.1} parent=31 // pred_fallthru
          _
      $region32: #{tpu_custom_call.1} parent=5 // pred_fallthru
        _
      %p2067 = scmp.le.s32.totalorder 2, %s15
      // Predicated region
      $region41: #{tpu_custom_call.1} parent=5 // pred_check
        %p2068 = pneg %p2067
      $region42: #{tpu_custom_call.1} parent=5 // pred_check_branch
        %2070 = sbr.rel (%p2068) target = $region44
      $region43: #{tpu_custom_call.1} parent=5 // pred_region
        %s2071 = ssub.s32 %s15, 2
        // Predicated region
        $region45: #{tpu_custom_call.1} parent=43 // pred_check
          %p2072 = pneg %p112
        $region46: #{tpu_custom_call.1} parent=43 // pred_check_branch
          %2074 = sbr.rel (%p2072) target = $region48
        $region47: #{tpu_custom_call.1} parent=43 // pred_region
          %s2075 = sand.u32 %s97, 1
          %s2076 = scalar_lea.sflag [#allocation4], %s2075
          %s2077 = sand.u32 %s97, 1
          %s2078 = smul.addr %s2077, 128
          %s2079 = scalar_lea.vmem [#allocation5], %s2078
          %2080 = dma.done %s2076, 2048
        $region48: #{tpu_custom_call.1} parent=43 // pred_fallthru
          _
      $region44: #{tpu_custom_call.1} parent=5 // pred_fallthru
        _
    $region6: #{tpu_custom_call.1} parent=1 // loop_footer
      %s19 = sadd.s32 1, %s15
    $region7: #{tpu_custom_call.1} parent=1 // loop_footer_branch
      %14 = sbr.rel target = $region3
    $region8: #{tpu_custom_call.1} parent=1 // loop_exit
      _
    %2081 = vsyncpa [#allocation3], 1
    %s2082 = scalar_lea.sflag [#allocation3], 1
    %2083 = vsyncpa %s2082, 1
    %2084 = vsyncpa [#allocation4], 1
    %s2085 = scalar_lea.sflag [#allocation4], 1
    %2086 = vsyncpa %s2085, 1

</llo_original>
